<compile_context>
chip_gen: v7x
topology: tpu7x:2x2x1
jax: 0.10.0
libtpu: 0.0.40
codegen_flags: <defaults>
</compile_context>

<pallas_src>
import functools

import jax
import jax.numpy as jnp
from jax.experimental import pallas as pl
from jax.experimental.pallas import tpu as pltpu

NEG_SLOPE = 0.2


def _round_up(x, m):
    return ((x + m - 1) // m) * m


# ----------------------------- fused kernel ----------------------------------
def _gat_layer(a, x, w, attn_t, b):
    # a: [N, N], x: [N, Fin_p], w: [Fin_p, Fout_p], attn_t: [Fout_p, 2],
    # b: [1, Fout_p]  ->  [N, Fout_p]
    h = jnp.dot(x, w, preferred_element_type=jnp.float32)            # [N, Fout_p]
    st = jnp.dot(h, attn_t, preferred_element_type=jnp.float32)      # [N, 2]
    s = st[:, 0:1]                                                    # src score (row i)
    t = st[:, 1:2]                                                    # dst score (col j)

    e = s + t.T                                                       # E[i,j] = s_i + t_j
    e = jnp.where(e >= 0, e, NEG_SLOPE * e)                           # LeakyReLU(0.2)
    # TODO(synk): softmax is unstabilized (matches the torch reference); add a
    # masked row-max subtraction if weights/features are ever realistically scaled.
    e = jnp.exp(e)

    p = a * e                                                         # mask by adjacency
    d = jnp.sum(p, axis=1, keepdims=True) + 0.001
    p = p / d                                                         # row-normalize

    out = jnp.dot(p, h, preferred_element_type=jnp.float32) + b
    return jnp.maximum(out, 0.0)                                      # ReLU activation


def gat_fused_kernel(a_ref, x_ref,
                     w0_ref, attn0_ref, b0_ref,
                     w1_ref, attn1_ref, b1_ref,
                     o_ref):
    a = a_ref[...]
    h = _gat_layer(a, x_ref[...], w0_ref[...], attn0_ref[...], b0_ref[...])
    o_ref[...] = _gat_layer(a, h, w1_ref[...], attn1_ref[...], b1_ref[...])


# ----------------------------- wrapper ----------------------------------------
def squeeze_pad_params(p, out_channels, in_pad, out_pad):
    """num_heads == 1: squeeze head dim, pre-transpose attn to [Fout, 2], zero-pad."""
    W = p["W"][:, :, 0]                                               # [Fin, Fout]
    attn_t = jnp.stack([p["attn"][:out_channels, 0],                  # col 0 = src
                        p["attn"][out_channels:, 0]], axis=1)         # col 1 = dst
    b = p["b"]                                                        # [1, Fout]
    f_in, f_out = W.shape
    Wp = jnp.pad(W, ((0, in_pad - f_in), (0, out_pad - f_out)))
    ap = jnp.pad(attn_t, ((0, out_pad - f_out), (0, 0)))
    bp = jnp.pad(b, ((0, 0), (0, out_pad - f_out)))
    return Wp, ap, bp


@functools.partial(jax.jit, static_argnums=(4, 5))
def gat_forward(A, X, params0, params1, c0, c1):
    N, f_in = X.shape
    fin_p = _round_up(f_in, 128)    # 1433 -> 1536
    c0_p = _round_up(c0, 128)       #  140 ->  256
    c1_p = _round_up(c1, 128)       #    7 ->  128

    W0, a0, b0 = squeeze_pad_params(params0, c0, fin_p, c0_p)
    W1, a1, b1 = squeeze_pad_params(params1, c1, c0_p, c1_p)
    Xp = jnp.pad(X, ((0, 0), (0, fin_p - f_in)))

    # Advisory cost estimate: two projections, two attention-score matmuls,
    # two aggregation matmuls, plus 2*N*N transcendentals (exp).
    flops = (2 * N * fin_p * c0_p + 2 * N * c0_p * 2 + 2 * N * N * c0_p +
             2 * N * c0_p * c1_p + 2 * N * c1_p * 2 + 2 * N * N * c1_p)
    bytes_accessed = 4 * (N * N + N * fin_p +
                          fin_p * c0_p + c0_p * 2 + c0_p +
                          c0_p * c1_p + c1_p * 2 + c1_p +
                          N * c1_p)
    cost = pl.CostEstimate(flops=flops,
                           transcendentals=2 * N * N,
                           bytes_accessed=bytes_accessed)

    vmem = pl.BlockSpec(memory_space=pltpu.MemorySpace.VMEM)
    out_p = pl.pallas_call(
        gat_fused_kernel,
        out_shape=jax.ShapeDtypeStruct((N, c1_p), jnp.float32),
        in_specs=[vmem] * 8,
        out_specs=vmem,
        compiler_params=pltpu.CompilerParams(vmem_limit_bytes=32 * 1024 * 1024),
        cost_estimate=cost,
    )(A, Xp, W0, a0, b0, W1, a1, b1)

    return out_p[:, :c1]            # drop the zero-padded output lanes


# ---------------- parameter construction (deterministic, torch-style init) ----
def init_gatconv_params(key, in_channels, out_channels, num_heads=1):
    k_w, k_a, k_b = jax.random.split(key, 3)
    # torch.rand(...)/10
    W = jax.random.uniform(k_w, (in_channels, out_channels, num_heads), jnp.float32) / 10.0
    attn = jax.random.uniform(k_a, (out_channels * 2, num_heads), jnp.float32) / 10.0
    b = jax.random.uniform(k_b, (num_heads, out_channels), jnp.float32) / 10.0
    return {"W": W, "attn": attn, "b": b}


# ---------------- pure-JAX reference (mirrors the torch einsums exactly) ------
def gatconv_ref(A, X, p, out_channels):
    W, attn, b = p["W"], p["attn"], p["b"]
    Xh = jnp.einsum("ik,kjl->ijl", X, W)
    X0 = jnp.einsum("ijk,jk->ik", Xh, attn[:out_channels, :])
    X1 = jnp.einsum("ijk,jk->ik", Xh, attn[out_channels:, :])
    E = X0[:, None, :] + X1[None, :, :]
    E = jnp.where(E >= 0, E, NEG_SLOPE * E)
    E = jnp.exp(E)
    Ah = A[:, :, None] * E
    d = jnp.sum(Ah, axis=1) + 0.001
    Ah = (1.0 / d)[:, None, :] * Ah
    out = jnp.einsum("ikl,kjl->ilj", Ah, Xh) + b
    return jax.nn.relu(out)


def gat_ref(A, X, params0, params1, c0, c1):
    h = gatconv_ref(A, X, params0, c0).reshape(X.shape[0], -1)
    o = gatconv_ref(A, h, params1, c1).reshape(X.shape[0], -1)
    return o


if __name__ == "__main__":
    key = jax.random.PRNGKey(0)
    k_a, k_x, k_p0, k_p1 = jax.random.split(key, 4)

    N, F_IN, F_HID, F_OUT = 32, 1433, 140, 7  # feature dims fixed by the module

    # Dense adjacency (random edges + self loops), small node features so that
    # exp() in the attention stays finite with the module's rand/10 param init.
    A = (jax.random.uniform(k_a, (N, N)) < 0.3).astype(jnp.float32)
    A = jnp.maximum(A, jnp.eye(N, dtype=jnp.float32))
    X = jax.random.uniform(k_x, (N, F_IN), jnp.float32) * 0.01

    params0 = init_gatconv_params(k_p0, F_IN, F_HID)
    params1 = init_gatconv_params(k_p1, F_HID, F_OUT)

    out = gat_forward(A, X, params0, params1, F_HID, F_OUT)
    out = jax.block_until_ready(out)

    ref = gat_ref(A, X, params0, params1, F_HID, F_OUT)
    assert out.shape == (N, F_OUT), out.shape
    assert jnp.allclose(out, ref, rtol=1e-3, atol=1e-3), "mismatch vs reference"

    print("KERNEL_OK")
</pallas_src>

<mosaic_0001>
module attributes {stable_mosaic.version = 11 : i64} {
  func.func @gat_fused_kernel(%arg0: memref<32x32xf32, #tpu.memory_space<vmem>>, %arg1: memref<32x1536xf32, #tpu.memory_space<vmem>>, %arg2: memref<1536x256xf32, #tpu.memory_space<vmem>>, %arg3: memref<256x2xf32, #tpu.memory_space<vmem>>, %arg4: memref<1x256xf32, #tpu.memory_space<vmem>>, %arg5: memref<256x128xf32, #tpu.memory_space<vmem>>, %arg6: memref<128x2xf32, #tpu.memory_space<vmem>>, %arg7: memref<1x128xf32, #tpu.memory_space<vmem>>, %arg8: memref<32x128xf32, #tpu.memory_space<vmem>>) attributes {dimension_semantics = [], scalar_prefetch = 0 : i64, scratch_operands = 0 : i64, tpu.core_type = #tpu.core_type<tc>} {
    %c0 = arith.constant 0 : index
    %c0_0 = arith.constant 0 : index
    %0 = vector.load %arg0[%c0, %c0_0] : memref<32x32xf32, #tpu.memory_space<vmem>>, vector<32x32xf32>
    %c0_1 = arith.constant 0 : index
    %c0_2 = arith.constant 0 : index
    %1 = vector.load %arg1[%c0_1, %c0_2] : memref<32x1536xf32, #tpu.memory_space<vmem>>, vector<32x1536xf32>
    %c0_3 = arith.constant 0 : index
    %c0_4 = arith.constant 0 : index
    %2 = vector.load %arg2[%c0_3, %c0_4] : memref<1536x256xf32, #tpu.memory_space<vmem>>, vector<1536x256xf32>
    %c0_5 = arith.constant 0 : index
    %c0_6 = arith.constant 0 : index
    %3 = vector.load %arg3[%c0_5, %c0_6] : memref<256x2xf32, #tpu.memory_space<vmem>>, vector<256x2xf32>
    %c0_7 = arith.constant 0 : index
    %c0_8 = arith.constant 0 : index
    %4 = vector.load %arg4[%c0_7, %c0_8] : memref<1x256xf32, #tpu.memory_space<vmem>>, vector<1x256xf32>
    %cst = arith.constant dense<0.000000e+00> : vector<32x256xf32>
    %5 = tpu.matmul %1, %2, %cst {dimension_numbers = #tpu.dot_dimension_numbers<[1], [0], [0], [1], [0, 0, 1, 1], [], []>} : vector<32x1536xf32>, vector<1536x256xf32>, vector<32x256xf32> -> vector<32x256xf32>
    %cst_9 = arith.constant dense<0.000000e+00> : vector<32x2xf32>
    %6 = tpu.matmul %5, %3, %cst_9 {dimension_numbers = #tpu.dot_dimension_numbers<[1], [0], [0], [1], [0, 0, 1, 1], [], []>} : vector<32x256xf32>, vector<256x2xf32>, vector<32x2xf32> -> vector<32x2xf32>
    %7 = vector.extract_strided_slice %6 {offsets = [0, 0], sizes = [32, 1], strides = [1, 1]} : vector<32x2xf32> to vector<32x1xf32>
    %8 = vector.extract_strided_slice %6 {offsets = [0, 1], sizes = [32, 1], strides = [1, 1]} : vector<32x2xf32> to vector<32x1xf32>
    %9 = tpu.transpose %8, [1, 0] : vector<32x1xf32> -> vector<1x32xf32>
    %10 = vector.broadcast %7 : vector<32x1xf32> to vector<32x32xf32>
    %11 = vector.broadcast %9 : vector<1x32xf32> to vector<32x32xf32>
    %12 = arith.addf %10, %11 : vector<32x32xf32>
    %cst_10 = arith.constant 0.000000e+00 : f32
    %13 = vector.broadcast %cst_10 : f32 to vector<32x32xf32>
    %14 = arith.cmpf oge, %12, %13 : vector<32x32xf32>
    %cst_11 = arith.constant 2.000000e-01 : f32
    %15 = vector.broadcast %cst_11 : f32 to vector<32x32xf32>
    %16 = arith.mulf %15, %12 : vector<32x32xf32>
    %17 = arith.select %14, %12, %16 : vector<32x32xi1>, vector<32x32xf32>
    %18 = math.exp %17 : vector<32x32xf32>
    %19 = arith.mulf %0, %18 : vector<32x32xf32>
    %cst_12 = arith.constant dense<0.000000e+00> : vector<32xf32>
    %20 = vector.multi_reduction <add>, %19, %cst_12 [1] : vector<32x32xf32> to vector<32xf32>
    %21 = vector.shape_cast %20 : vector<32xf32> to vector<32x1xf32>
    %cst_13 = arith.constant 1.000000e-03 : f32
    %22 = vector.broadcast %cst_13 : f32 to vector<32x1xf32>
    %23 = arith.addf %21, %22 : vector<32x1xf32>
    %24 = vector.broadcast %23 : vector<32x1xf32> to vector<32x32xf32>
    %25 = arith.divf %19, %24 : vector<32x32xf32>
    %cst_14 = arith.constant dense<0.000000e+00> : vector<32x256xf32>
    %26 = tpu.matmul %25, %5, %cst_14 {dimension_numbers = #tpu.dot_dimension_numbers<[1], [0], [0], [1], [0, 0, 1, 1], [], []>} : vector<32x32xf32>, vector<32x256xf32>, vector<32x256xf32> -> vector<32x256xf32>
    %27 = vector.broadcast %4 : vector<1x256xf32> to vector<32x256xf32>
    %28 = arith.addf %26, %27 : vector<32x256xf32>
    %cst_15 = arith.constant 0.000000e+00 : f32
    %29 = vector.broadcast %cst_15 : f32 to vector<32x256xf32>
    %30 = arith.maximumf %28, %29 : vector<32x256xf32>
    %c0_16 = arith.constant 0 : index
    %c0_17 = arith.constant 0 : index
    %31 = vector.load %arg5[%c0_16, %c0_17] : memref<256x128xf32, #tpu.memory_space<vmem>>, vector<256x128xf32>
    %c0_18 = arith.constant 0 : index
    %c0_19 = arith.constant 0 : index
    %32 = vector.load %arg6[%c0_18, %c0_19] : memref<128x2xf32, #tpu.memory_space<vmem>>, vector<128x2xf32>
    %c0_20 = arith.constant 0 : index
    %c0_21 = arith.constant 0 : index
    %33 = vector.load %arg7[%c0_20, %c0_21] : memref<1x128xf32, #tpu.memory_space<vmem>>, vector<1x128xf32>
    %cst_22 = arith.constant dense<0.000000e+00> : vector<32x128xf32>
    %34 = tpu.matmul %30, %31, %cst_22 {dimension_numbers = #tpu.dot_dimension_numbers<[1], [0], [0], [1], [0, 0, 1, 1], [], []>} : vector<32x256xf32>, vector<256x128xf32>, vector<32x128xf32> -> vector<32x128xf32>
    %cst_23 = arith.constant dense<0.000000e+00> : vector<32x2xf32>
    %35 = tpu.matmul %34, %32, %cst_23 {dimension_numbers = #tpu.dot_dimension_numbers<[1], [0], [0], [1], [0, 0, 1, 1], [], []>} : vector<32x128xf32>, vector<128x2xf32>, vector<32x2xf32> -> vector<32x2xf32>
    %36 = vector.extract_strided_slice %35 {offsets = [0, 0], sizes = [32, 1], strides = [1, 1]} : vector<32x2xf32> to vector<32x1xf32>
    %37 = vector.extract_strided_slice %35 {offsets = [0, 1], sizes = [32, 1], strides = [1, 1]} : vector<32x2xf32> to vector<32x1xf32>
    %38 = tpu.transpose %37, [1, 0] : vector<32x1xf32> -> vector<1x32xf32>
    %39 = vector.broadcast %36 : vector<32x1xf32> to vector<32x32xf32>
    %40 = vector.broadcast %38 : vector<1x32xf32> to vector<32x32xf32>
    %41 = arith.addf %39, %40 : vector<32x32xf32>
    %cst_24 = arith.constant 0.000000e+00 : f32
    %42 = vector.broadcast %cst_24 : f32 to vector<32x32xf32>
    %43 = arith.cmpf oge, %41, %42 : vector<32x32xf32>
    %cst_25 = arith.constant 2.000000e-01 : f32
    %44 = vector.broadcast %cst_25 : f32 to vector<32x32xf32>
    %45 = arith.mulf %44, %41 : vector<32x32xf32>
    %46 = arith.select %43, %41, %45 : vector<32x32xi1>, vector<32x32xf32>
    %47 = math.exp %46 : vector<32x32xf32>
    %48 = arith.mulf %0, %47 : vector<32x32xf32>
    %cst_26 = arith.constant dense<0.000000e+00> : vector<32xf32>
    %49 = vector.multi_reduction <add>, %48, %cst_26 [1] : vector<32x32xf32> to vector<32xf32>
    %50 = vector.shape_cast %49 : vector<32xf32> to vector<32x1xf32>
    %cst_27 = arith.constant 1.000000e-03 : f32
    %51 = vector.broadcast %cst_27 : f32 to vector<32x1xf32>
    %52 = arith.addf %50, %51 : vector<32x1xf32>
    %53 = vector.broadcast %52 : vector<32x1xf32> to vector<32x32xf32>
    %54 = arith.divf %48, %53 : vector<32x32xf32>
    %cst_28 = arith.constant dense<0.000000e+00> : vector<32x128xf32>
    %55 = tpu.matmul %54, %34, %cst_28 {dimension_numbers = #tpu.dot_dimension_numbers<[1], [0], [0], [1], [0, 0, 1, 1], [], []>} : vector<32x32xf32>, vector<32x128xf32>, vector<32x128xf32> -> vector<32x128xf32>
    %56 = vector.broadcast %33 : vector<1x128xf32> to vector<32x128xf32>
    %57 = arith.addf %55, %56 : vector<32x128xf32>
    %cst_29 = arith.constant 0.000000e+00 : f32
    %58 = vector.broadcast %cst_29 : f32 to vector<32x128xf32>
    %59 = arith.maximumf %57, %58 : vector<32x128xf32>
    %c0_30 = arith.constant 0 : index
    %c0_31 = arith.constant 0 : index
    %60 = vector.load %arg8[%c0_30, %c0_31] : memref<32x128xf32, #tpu.memory_space<vmem>>, vector<32x128xf32>
    tpu.vector_store %arg8[%c0_30, %c0_31], %59 {strides = array<i32>} : memref<32x128xf32, #tpu.memory_space<vmem>>, vector<32x128xf32>,
    return
  }
}

</mosaic_0001>

<llo_original>
// kernel: gat_forward.1
$region0: #{gat_forward.1}
  #allocation0 [shape = 'u32[]', space=smem, size = 0x4, offset = 0x4, fixed_abs, tag = 'smem constant byte address 0x4 - core index']
  #allocation1 [shape = 'u32[144,128]{1,0:T(1,128)}', space=vmem, size = 0x12000, scoped, tag = 'internal scratch']
  %s0 = inlined_call_operand.vmem [shape: f32[32,32], index: 0, kind: input, shape index: {}]
  %s1 = inlined_call_operand.vmem [shape: f32[32,1536], index: 1, kind: input, shape index: {}]
  %s2 = inlined_call_operand.vmem [shape: f32[1536,256], index: 2, kind: input, shape index: {}]
  %s3 = inlined_call_operand.vmem [shape: f32[256,2], index: 3, kind: input, shape index: {}]
  %s4 = inlined_call_operand.vmem [shape: f32[1,256], index: 4, kind: input, shape index: {}]
  %s5 = inlined_call_operand.vmem [shape: f32[256,128], index: 5, kind: input, shape index: {}]
  %s6 = inlined_call_operand.vmem [shape: f32[128,2], index: 6, kind: input, shape index: {}]
  %s7 = inlined_call_operand.vmem [shape: f32[1,128], index: 7, kind: input, shape index: {}]
  %s8 = inlined_call_operand.vmem [shape: f32[32,128], index: 8, kind: output, shape index: {}]
  %s9 = sld [smem:[#allocation0]]
  $region42: #{gat_forward.1} parent=0
    _
  %s11 = ssub.s32 1, %s9
  %s12 = scalar_select 0, %s11, %s9
  // Predicated region
  $region2: #{gat_forward.1} parent=0 // pred_check
    _
  $region3: #{gat_forward.1} parent=0 // pred_check_branch
    %14 = sbr.rel (0) target = $region5
  $region4: #{gat_forward.1} parent=0 // pred_region
    _
  $region5: #{gat_forward.1} parent=0 // pred_fallthru
    _
  // Predicated region
  $region6: #{gat_forward.1} parent=0 // pred_check
    _
  $region7: #{gat_forward.1} parent=0 // pred_check_branch
    %16 = sbr.rel (0) target = $region9
  $region8: #{gat_forward.1} parent=0 // pred_region
    _
  $region9: #{gat_forward.1} parent=0 // pred_fallthru
    _
  // Predicated region
  $region10: #{gat_forward.1} parent=0 // pred_check
    _
  $region11: #{gat_forward.1} parent=0 // pred_check_branch
    %18 = sbr.rel (0) target = $region13
  $region12: #{gat_forward.1} parent=0 // pred_region
    _
  $region13: #{gat_forward.1} parent=0 // pred_fallthru
    _
  // Predicated region
  $region14: #{gat_forward.1} parent=0 // pred_check
    _
  $region15: #{gat_forward.1} parent=0 // pred_check_branch
    %20 = sbr.rel (0) target = $region17
  $region16: #{gat_forward.1} parent=0 // pred_region
    _
  $region17: #{gat_forward.1} parent=0 // pred_fallthru
    _
  // Predicated region
  $region18: #{gat_forward.1} parent=0 // pred_check
    _
  $region19: #{gat_forward.1} parent=0 // pred_check_branch
    %22 = sbr.rel (0) target = $region21
  $region20: #{gat_forward.1} parent=0 // pred_region
    _
  $region21: #{gat_forward.1} parent=0 // pred_fallthru
    _
  // Predicated region
  $region22: #{gat_forward.1} parent=0 // pred_check
    _
  $region23: #{gat_forward.1} parent=0 // pred_check_branch
    %24 = sbr.rel (0) target = $region25
  $region24: #{gat_forward.1} parent=0 // pred_region
    _
  $region25: #{gat_forward.1} parent=0 // pred_fallthru
    _
  // Predicated region
  $region26: #{gat_forward.1} parent=0 // pred_check
    _
  $region27: #{gat_forward.1} parent=0 // pred_check_branch
    %26 = sbr.rel (0) target = $region29
  $region28: #{gat_forward.1} parent=0 // pred_region
    _
  $region29: #{gat_forward.1} parent=0 // pred_fallthru
    _
  // Predicated region
  $region30: #{gat_forward.1} parent=0 // pred_check
    _
  $region31: #{gat_forward.1} parent=0 // pred_check_branch
    %28 = sbr.rel (0) target = $region33
  $region32: #{gat_forward.1} parent=0 // pred_region
    _
  $region33: #{gat_forward.1} parent=0 // pred_fallthru
    _
  %v29 = vld [vmem:[%s0] sm:$0xff]
  %v30 = vld [vmem:[%s0 + $0x8] sm:$0xff]
  %v31 = vld [vmem:[%s0 + $0x10] sm:$0xff]
  %v32 = vld [vmem:[%s0 + $0x18] sm:$0xff]
  %v33 = vld [vmem:[%s1] sm:$0xff]
  %v34 = vld [vmem:[%s1 + $0x8] sm:$0xff]
  %v35 = vld [vmem:[%s1 + $0x10] sm:$0xff]
  %v36 = vld [vmem:[%s1 + $0x18] sm:$0xff]
  %v37 = vld [vmem:[%s1 + $0x20] sm:$0xff]
  %v38 = vld [vmem:[%s1 + $0x28] sm:$0xff]
  %v39 = vld [vmem:[%s1 + $0x30] sm:$0xff]
  %v40 = vld [vmem:[%s1 + $0x38] sm:$0xff]
  %v41 = vld [vmem:[%s1 + $0x40] sm:$0xff]
  %v42 = vld [vmem:[%s1 + $0x48] sm:$0xff]
  %v43 = vld [vmem:[%s1 + $0x50] sm:$0xff]
  %v44 = vld [vmem:[%s1 + $0x58] sm:$0xff]
  %v45 = vld [vmem:[%s1 + $0x60] sm:$0xff]
  %v46 = vld [vmem:[%s1 + $0x68] sm:$0xff]
  %v47 = vld [vmem:[%s1 + $0x70] sm:$0xff]
  %v48 = vld [vmem:[%s1 + $0x78] sm:$0xff]
  %v49 = vld [vmem:[%s1 + $0x80] sm:$0xff]
  %v50 = vld [vmem:[%s1 + $0x88] sm:$0xff]
  %v51 = vld [vmem:[%s1 + $0x90] sm:$0xff]
  %v52 = vld [vmem:[%s1 + $0x98] sm:$0xff]
  %v53 = vld [vmem:[%s1 + $0xa0] sm:$0xff]
  %v54 = vld [vmem:[%s1 + $0xa8] sm:$0xff]
  %v55 = vld [vmem:[%s1 + $0xb0] sm:$0xff]
  %v56 = vld [vmem:[%s1 + $0xb8] sm:$0xff]
  %v57 = vld [vmem:[%s1 + $0xc0] sm:$0xff]
  %v58 = vld [vmem:[%s1 + $0xc8] sm:$0xff]
  %v59 = vld [vmem:[%s1 + $0xd0] sm:$0xff]
  %v60 = vld [vmem:[%s1 + $0xd8] sm:$0xff]
  %v61 = vld [vmem:[%s1 + $0xe0] sm:$0xff]
  %v62 = vld [vmem:[%s1 + $0xe8] sm:$0xff]
  %v63 = vld [vmem:[%s1 + $0xf0] sm:$0xff]
  %v64 = vld [vmem:[%s1 + $0xf8] sm:$0xff]
  %v65 = vld [vmem:[%s1 + $0x100] sm:$0xff]
  %v66 = vld [vmem:[%s1 + $0x108] sm:$0xff]
  %v67 = vld [vmem:[%s1 + $0x110] sm:$0xff]
  %v68 = vld [vmem:[%s1 + $0x118] sm:$0xff]
  %v69 = vld [vmem:[%s1 + $0x120] sm:$0xff]
  %v70 = vld [vmem:[%s1 + $0x128] sm:$0xff]
  %v71 = vld [vmem:[%s1 + $0x130] sm:$0xff]
  %v72 = vld [vmem:[%s1 + $0x138] sm:$0xff]
  %v73 = vld [vmem:[%s1 + $0x140] sm:$0xff]
  %v74 = vld [vmem:[%s1 + $0x148] sm:$0xff]
  %v75 = vld [vmem:[%s1 + $0x150] sm:$0xff]
  %v76 = vld [vmem:[%s1 + $0x158] sm:$0xff]
  %v77 = vld [vmem:[%s1 + $0x160] sm:$0xff]
  %v78 = vld [vmem:[%s1 + $0x168] sm:$0xff]
  %v79 = vld [vmem:[%s1 + $0x170] sm:$0xff]
  %v80 = vld [vmem:[%s1 + $0x178] sm:$0xff]
  %v81 = vld [vmem:[%s2] sm:$0xff]
  %v82 = vld [vmem:[%s2 + $0x8] sm:$0xff]
  %v83 = vld [vmem:[%s2 + $0x10] sm:$0xff]
  %v84 = vld [vmem:[%s2 + $0x18] sm:$0xff]
  %v85 = vld [vmem:[%s2 + $0x20] sm:$0xff]
  %v86 = vld [vmem:[%s2 + $0x28] sm:$0xff]
  %v87 = vld [vmem:[%s2 + $0x30] sm:$0xff]
  %v88 = vld [vmem:[%s2 + $0x38] sm:$0xff]
  %v89 = vld [vmem:[%s2 + $0x40] sm:$0xff]
  %v90 = vld [vmem:[%s2 + $0x48] sm:$0xff]
  %v91 = vld [vmem:[%s2 + $0x50] sm:$0xff]
  %v92 = vld [vmem:[%s2 + $0x58] sm:$0xff]
  %v93 = vld [vmem:[%s2 + $0x60] sm:$0xff]
  %v94 = vld [vmem:[%s2 + $0x68] sm:$0xff]
  %v95 = vld [vmem:[%s2 + $0x70] sm:$0xff]
  %v96 = vld [vmem:[%s2 + $0x78] sm:$0xff]
  %v97 = vld [vmem:[%s2 + $0x80] sm:$0xff]
  %v98 = vld [vmem:[%s2 + $0x88] sm:$0xff]
  %v99 = vld [vmem:[%s2 + $0x90] sm:$0xff]
  %v100 = vld [vmem:[%s2 + $0x98] sm:$0xff]
  %v101 = vld [vmem:[%s2 + $0xa0] sm:$0xff]
  %v102 = vld [vmem:[%s2 + $0xa8] sm:$0xff]
  %v103 = vld [vmem:[%s2 + $0xb0] sm:$0xff]
  %v104 = vld [vmem:[%s2 + $0xb8] sm:$0xff]
  %v105 = vld [vmem:[%s2 + $0xc0] sm:$0xff]
  %v106 = vld [vmem:[%s2 + $0xc8] sm:$0xff]
  %v107 = vld [vmem:[%s2 + $0xd0] sm:$0xff]
  %v108 = vld [vmem:[%s2 + $0xd8] sm:$0xff]
  %v109 = vld [vmem:[%s2 + $0xe0] sm:$0xff]
  %v110 = vld [vmem:[%s2 + $0xe8] sm:$0xff]
  %v111 = vld [vmem:[%s2 + $0xf0] sm:$0xff]
  %v112 = vld [vmem:[%s2 + $0xf8] sm:$0xff]
  %v113 = vld [vmem:[%s2 + $0x100] sm:$0xff]
  %v114 = vld [vmem:[%s2 + $0x108] sm:$0xff]
  %v115 = vld [vmem:[%s2 + $0x110] sm:$0xff]
  %v116 = vld [vmem:[%s2 + $0x118] sm:$0xff]
  %v117 = vld [vmem:[%s2 + $0x120] sm:$0xff]
  %v118 = vld [vmem:[%s2 + $0x128] sm:$0xff]
  %v119 = vld [vmem:[%s2 + $0x130] sm:$0xff]
  %v120 = vld [vmem:[%s2 + $0x138] sm:$0xff]
  %v121 = vld [vmem:[%s2 + $0x140] sm:$0xff]
  %v122 = vld [vmem:[%s2 + $0x148] sm:$0xff]
  %v123 = vld [vmem:[%s2 + $0x150] sm:$0xff]
  %v124 = vld [vmem:[%s2 + $0x158] sm:$0xff]
  %v125 = vld [vmem:[%s2 + $0x160] sm:$0xff]
  %v126 = vld [vmem:[%s2 + $0x168] sm:$0xff]
  %v127 = vld [vmem:[%s2 + $0x170] sm:$0xff]
  %v128 = vld [vmem:[%s2 + $0x178] sm:$0xff]
  %v129 = vld [vmem:[%s2 + $0x180] sm:$0xff]
  %v130 = vld [vmem:[%s2 + $0x188] sm:$0xff]
  %v131 = vld [vmem:[%s2 + $0x190] sm:$0xff]
  %v132 = vld [vmem:[%s2 + $0x198] sm:$0xff]
  %v133 = vld [vmem:[%s2 + $0x1a0] sm:$0xff]
  %v134 = vld [vmem:[%s2 + $0x1a8] sm:$0xff]
  %v135 = vld [vmem:[%s2 + $0x1b0] sm:$0xff]
  %v136 = vld [vmem:[%s2 + $0x1b8] sm:$0xff]
  %v137 = vld [vmem:[%s2 + $0x1c0] sm:$0xff]
  %v138 = vld [vmem:[%s2 + $0x1c8] sm:$0xff]
  %v139 = vld [vmem:[%s2 + $0x1d0] sm:$0xff]
  %v140 = vld [vmem:[%s2 + $0x1d8] sm:$0xff]
  %v141 = vld [vmem:[%s2 + $0x1e0] sm:$0xff]
  %v142 = vld [vmem:[%s2 + $0x1e8] sm:$0xff]
  %v143 = vld [vmem:[%s2 + $0x1f0] sm:$0xff]
  %v144 = vld [vmem:[%s2 + $0x1f8] sm:$0xff]
  %v145 = vld [vmem:[%s2 + $0x200] sm:$0xff]
  %v146 = vld [vmem:[%s2 + $0x208] sm:$0xff]
  %v147 = vld [vmem:[%s2 + $0x210] sm:$0xff]
  %v148 = vld [vmem:[%s2 + $0x218] sm:$0xff]
  %v149 = vld [vmem:[%s2 + $0x220] sm:$0xff]
  %v150 = vld [vmem:[%s2 + $0x228] sm:$0xff]
  %v151 = vld [vmem:[%s2 + $0x230] sm:$0xff]
  %v152 = vld [vmem:[%s2 + $0x238] sm:$0xff]
  %v153 = vld [vmem:[%s2 + $0x240] sm:$0xff]
  %v154 = vld [vmem:[%s2 + $0x248] sm:$0xff]
  %v155 = vld [vmem:[%s2 + $0x250] sm:$0xff]
  %v156 = vld [vmem:[%s2 + $0x258] sm:$0xff]
  %v157 = vld [vmem:[%s2 + $0x260] sm:$0xff]
  %v158 = vld [vmem:[%s2 + $0x268] sm:$0xff]
  %v159 = vld [vmem:[%s2 + $0x270] sm:$0xff]
  %v160 = vld [vmem:[%s2 + $0x278] sm:$0xff]
  %v161 = vld [vmem:[%s2 + $0x280] sm:$0xff]
  %v162 = vld [vmem:[%s2 + $0x288] sm:$0xff]
  %v163 = vld [vmem:[%s2 + $0x290] sm:$0xff]
  %v164 = vld [vmem:[%s2 + $0x298] sm:$0xff]
  %v165 = vld [vmem:[%s2 + $0x2a0] sm:$0xff]
  %v166 = vld [vmem:[%s2 + $0x2a8] sm:$0xff]
  %v167 = vld [vmem:[%s2 + $0x2b0] sm:$0xff]
  %v168 = vld [vmem:[%s2 + $0x2b8] sm:$0xff]
  %v169 = vld [vmem:[%s2 + $0x2c0] sm:$0xff]
  %v170 = vld [vmem:[%s2 + $0x2c8] sm:$0xff]
  %v171 = vld [vmem:[%s2 + $0x2d0] sm:$0xff]
  %v172 = vld [vmem:[%s2 + $0x2d8] sm:$0xff]
  %v173 = vld [vmem:[%s2 + $0x2e0] sm:$0xff]
  %v174 = vld [vmem:[%s2 + $0x2e8] sm:$0xff]
  %v175 = vld [vmem:[%s2 + $0x2f0] sm:$0xff]
  %v176 = vld [vmem:[%s2 + $0x2f8] sm:$0xff]
  %v177 = vld [vmem:[%s2 + $0x300] sm:$0xff]
  %v178 = vld [vmem:[%s2 + $0x308] sm:$0xff]
  %v179 = vld [vmem:[%s2 + $0x310] sm:$0xff]
  %v180 = vld [vmem:[%s2 + $0x318] sm:$0xff]
  %v181 = vld [vmem:[%s2 + $0x320] sm:$0xff]
  %v182 = vld [vmem:[%s2 + $0x328] sm:$0xff]
  %v183 = vld [vmem:[%s2 + $0x330] sm:$0xff]
  %v184 = vld [vmem:[%s2 + $0x338] sm:$0xff]
  %v185 = vld [vmem:[%s2 + $0x340] sm:$0xff]
  %v186 = vld [vmem:[%s2 + $0x348] sm:$0xff]
  %v187 = vld [vmem:[%s2 + $0x350] sm:$0xff]
  %v188 = vld [vmem:[%s2 + $0x358] sm:$0xff]
  %v189 = vld [vmem:[%s2 + $0x360] sm:$0xff]
  %v190 = vld [vmem:[%s2 + $0x368] sm:$0xff]
  %v191 = vld [vmem:[%s2 + $0x370] sm:$0xff]
  %v192 = vld [vmem:[%s2 + $0x378] sm:$0xff]
  %v193 = vld [vmem:[%s2 + $0x380] sm:$0xff]
  %v194 = vld [vmem:[%s2 + $0x388] sm:$0xff]
  %v195 = vld [vmem:[%s2 + $0x390] sm:$0xff]
  %v196 = vld [vmem:[%s2 + $0x398] sm:$0xff]
  %v197 = vld [vmem:[%s2 + $0x3a0] sm:$0xff]
  %v198 = vld [vmem:[%s2 + $0x3a8] sm:$0xff]
  %v199 = vld [vmem:[%s2 + $0x3b0] sm:$0xff]
  %v200 = vld [vmem:[%s2 + $0x3b8] sm:$0xff]
  %v201 = vld [vmem:[%s2 + $0x3c0] sm:$0xff]
  %v202 = vld [vmem:[%s2 + $0x3c8] sm:$0xff]
  %v203 = vld [vmem:[%s2 + $0x3d0] sm:$0xff]
  %v204 = vld [vmem:[%s2 + $0x3d8] sm:$0xff]
  %v205 = vld [vmem:[%s2 + $0x3e0] sm:$0xff]
  %v206 = vld [vmem:[%s2 + $0x3e8] sm:$0xff]
  %v207 = vld [vmem:[%s2 + $0x3f0] sm:$0xff]
  %v208 = vld [vmem:[%s2 + $0x3f8] sm:$0xff]
  %v209 = vld [vmem:[%s2 + $0x400] sm:$0xff]
  %v210 = vld [vmem:[%s2 + $0x408] sm:$0xff]
  %v211 = vld [vmem:[%s2 + $0x410] sm:$0xff]
  %v212 = vld [vmem:[%s2 + $0x418] sm:$0xff]
  %v213 = vld [vmem:[%s2 + $0x420] sm:$0xff]
  %v214 = vld [vmem:[%s2 + $0x428] sm:$0xff]
  %v215 = vld [vmem:[%s2 + $0x430] sm:$0xff]
  %v216 = vld [vmem:[%s2 + $0x438] sm:$0xff]
  %v217 = vld [vmem:[%s2 + $0x440] sm:$0xff]
  %v218 = vld [vmem:[%s2 + $0x448] sm:$0xff]
  %v219 = vld [vmem:[%s2 + $0x450] sm:$0xff]
  %v220 = vld [vmem:[%s2 + $0x458] sm:$0xff]
  %v221 = vld [vmem:[%s2 + $0x460] sm:$0xff]
  %v222 = vld [vmem:[%s2 + $0x468] sm:$0xff]
  %v223 = vld [vmem:[%s2 + $0x470] sm:$0xff]
  %v224 = vld [vmem:[%s2 + $0x478] sm:$0xff]
  %v225 = vld [vmem:[%s2 + $0x480] sm:$0xff]
  %v226 = vld [vmem:[%s2 + $0x488] sm:$0xff]
  %v227 = vld [vmem:[%s2 + $0x490] sm:$0xff]
  %v228 = vld [vmem:[%s2 + $0x498] sm:$0xff]
  %v229 = vld [vmem:[%s2 + $0x4a0] sm:$0xff]
  %v230 = vld [vmem:[%s2 + $0x4a8] sm:$0xff]
  %v231 = vld [vmem:[%s2 + $0x4b0] sm:$0xff]
  %v232 = vld [vmem:[%s2 + $0x4b8] sm:$0xff]
  %v233 = vld [vmem:[%s2 + $0x4c0] sm:$0xff]
  %v234 = vld [vmem:[%s2 + $0x4c8] sm:$0xff]
  %v235 = vld [vmem:[%s2 + $0x4d0] sm:$0xff]
  %v236 = vld [vmem:[%s2 + $0x4d8] sm:$0xff]
  %v237 = vld [vmem:[%s2 + $0x4e0] sm:$0xff]
  %v238 = vld [vmem:[%s2 + $0x4e8] sm:$0xff]
  %v239 = vld [vmem:[%s2 + $0x4f0] sm:$0xff]
  %v240 = vld [vmem:[%s2 + $0x4f8] sm:$0xff]
  %v241 = vld [vmem:[%s2 + $0x500] sm:$0xff]
  %v242 = vld [vmem:[%s2 + $0x508] sm:$0xff]
  %v243 = vld [vmem:[%s2 + $0x510] sm:$0xff]
  %v244 = vld [vmem:[%s2 + $0x518] sm:$0xff]
  %v245 = vld [vmem:[%s2 + $0x520] sm:$0xff]
  %v246 = vld [vmem:[%s2 + $0x528] sm:$0xff]
  %v247 = vld [vmem:[%s2 + $0x530] sm:$0xff]
  %v248 = vld [vmem:[%s2 + $0x538] sm:$0xff]
  %v249 = vld [vmem:[%s2 + $0x540] sm:$0xff]
  %v250 = vld [vmem:[%s2 + $0x548] sm:$0xff]
  %v251 = vld [vmem:[%s2 + $0x550] sm:$0xff]
  %v252 = vld [vmem:[%s2 + $0x558] sm:$0xff]
  %v253 = vld [vmem:[%s2 + $0x560] sm:$0xff]
  %v254 = vld [vmem:[%s2 + $0x568] sm:$0xff]
  %v255 = vld [vmem:[%s2 + $0x570] sm:$0xff]
  %v256 = vld [vmem:[%s2 + $0x578] sm:$0xff]
  %v257 = vld [vmem:[%s2 + $0x580] sm:$0xff]
  %v258 = vld [vmem:[%s2 + $0x588] sm:$0xff]
  %v259 = vld [vmem:[%s2 + $0x590] sm:$0xff]
  %v260 = vld [vmem:[%s2 + $0x598] sm:$0xff]
  %v261 = vld [vmem:[%s2 + $0x5a0] sm:$0xff]
  %v262 = vld [vmem:[%s2 + $0x5a8] sm:$0xff]
  %v263 = vld [vmem:[%s2 + $0x5b0] sm:$0xff]
  %v264 = vld [vmem:[%s2 + $0x5b8] sm:$0xff]
  %v265 = vld [vmem:[%s2 + $0x5c0] sm:$0xff]
  %v266 = vld [vmem:[%s2 + $0x5c8] sm:$0xff]
  %v267 = vld [vmem:[%s2 + $0x5d0] sm:$0xff]
  %v268 = vld [vmem:[%s2 + $0x5d8] sm:$0xff]
  %v269 = vld [vmem:[%s2 + $0x5e0] sm:$0xff]
  %v270 = vld [vmem:[%s2 + $0x5e8] sm:$0xff]
  %v271 = vld [vmem:[%s2 + $0x5f0] sm:$0xff]
  %v272 = vld [vmem:[%s2 + $0x5f8] sm:$0xff]
  %v273 = vld [vmem:[%s2 + $0x600] sm:$0xff]
  %v274 = vld [vmem:[%s2 + $0x608] sm:$0xff]
  %v275 = vld [vmem:[%s2 + $0x610] sm:$0xff]
  %v276 = vld [vmem:[%s2 + $0x618] sm:$0xff]
  %v277 = vld [vmem:[%s2 + $0x620] sm:$0xff]
  %v278 = vld [vmem:[%s2 + $0x628] sm:$0xff]
  %v279 = vld [vmem:[%s2 + $0x630] sm:$0xff]
  %v280 = vld [vmem:[%s2 + $0x638] sm:$0xff]
  %v281 = vld [vmem:[%s2 + $0x640] sm:$0xff]
  %v282 = vld [vmem:[%s2 + $0x648] sm:$0xff]
  %v283 = vld [vmem:[%s2 + $0x650] sm:$0xff]
  %v284 = vld [vmem:[%s2 + $0x658] sm:$0xff]
  %v285 = vld [vmem:[%s2 + $0x660] sm:$0xff]
  %v286 = vld [vmem:[%s2 + $0x668] sm:$0xff]
  %v287 = vld [vmem:[%s2 + $0x670] sm:$0xff]
  %v288 = vld [vmem:[%s2 + $0x678] sm:$0xff]
  %v289 = vld [vmem:[%s2 + $0x680] sm:$0xff]
  %v290 = vld [vmem:[%s2 + $0x688] sm:$0xff]
  %v291 = vld [vmem:[%s2 + $0x690] sm:$0xff]
  %v292 = vld [vmem:[%s2 + $0x698] sm:$0xff]
  %v293 = vld [vmem:[%s2 + $0x6a0] sm:$0xff]
  %v294 = vld [vmem:[%s2 + $0x6a8] sm:$0xff]
  %v295 = vld [vmem:[%s2 + $0x6b0] sm:$0xff]
  %v296 = vld [vmem:[%s2 + $0x6b8] sm:$0xff]
  %v297 = vld [vmem:[%s2 + $0x6c0] sm:$0xff]
  %v298 = vld [vmem:[%s2 + $0x6c8] sm:$0xff]
  %v299 = vld [vmem:[%s2 + $0x6d0] sm:$0xff]
  %v300 = vld [vmem:[%s2 + $0x6d8] sm:$0xff]
  %v301 = vld [vmem:[%s2 + $0x6e0] sm:$0xff]
  %v302 = vld [vmem:[%s2 + $0x6e8] sm:$0xff]
  %v303 = vld [vmem:[%s2 + $0x6f0] sm:$0xff]
  %v304 = vld [vmem:[%s2 + $0x6f8] sm:$0xff]
  %v305 = vld [vmem:[%s2 + $0x700] sm:$0xff]
  %v306 = vld [vmem:[%s2 + $0x708] sm:$0xff]
  %v307 = vld [vmem:[%s2 + $0x710] sm:$0xff]
  %v308 = vld [vmem:[%s2 + $0x718] sm:$0xff]
  %v309 = vld [vmem:[%s2 + $0x720] sm:$0xff]
  %v310 = vld [vmem:[%s2 + $0x728] sm:$0xff]
  %v311 = vld [vmem:[%s2 + $0x730] sm:$0xff]
  %v312 = vld [vmem:[%s2 + $0x738] sm:$0xff]
  %v313 = vld [vmem:[%s2 + $0x740] sm:$0xff]
  %v314 = vld [vmem:[%s2 + $0x748] sm:$0xff]
  %v315 = vld [vmem:[%s2 + $0x750] sm:$0xff]
  %v316 = vld [vmem:[%s2 + $0x758] sm:$0xff]
  %v317 = vld [vmem:[%s2 + $0x760] sm:$0xff]
  %v318 = vld [vmem:[%s2 + $0x768] sm:$0xff]
  %v319 = vld [vmem:[%s2 + $0x770] sm:$0xff]
  %v320 = vld [vmem:[%s2 + $0x778] sm:$0xff]
  %v321 = vld [vmem:[%s2 + $0x780] sm:$0xff]
  %v322 = vld [vmem:[%s2 + $0x788] sm:$0xff]
  %v323 = vld [vmem:[%s2 + $0x790] sm:$0xff]
  %v324 = vld [vmem:[%s2 + $0x798] sm:$0xff]
  %v325 = vld [vmem:[%s2 + $0x7a0] sm:$0xff]
  %v326 = vld [vmem:[%s2 + $0x7a8] sm:$0xff]
  %v327 = vld [vmem:[%s2 + $0x7b0] sm:$0xff]
  %v328 = vld [vmem:[%s2 + $0x7b8] sm:$0xff]
  %v329 = vld [vmem:[%s2 + $0x7c0] sm:$0xff]
  %v330 = vld [vmem:[%s2 + $0x7c8] sm:$0xff]
  %v331 = vld [vmem:[%s2 + $0x7d0] sm:$0xff]
  %v332 = vld [vmem:[%s2 + $0x7d8] sm:$0xff]
  %v333 = vld [vmem:[%s2 + $0x7e0] sm:$0xff]
  %v334 = vld [vmem:[%s2 + $0x7e8] sm:$0xff]
  %v335 = vld [vmem:[%s2 + $0x7f0] sm:$0xff]
  %v336 = vld [vmem:[%s2 + $0x7f8] sm:$0xff]
  %v337 = vld [vmem:[%s2 + $0x800] sm:$0xff]
  %v338 = vld [vmem:[%s2 + $0x808] sm:$0xff]
  %v339 = vld [vmem:[%s2 + $0x810] sm:$0xff]
  %v340 = vld [vmem:[%s2 + $0x818] sm:$0xff]
  %v341 = vld [vmem:[%s2 + $0x820] sm:$0xff]
  %v342 = vld [vmem:[%s2 + $0x828] sm:$0xff]
  %v343 = vld [vmem:[%s2 + $0x830] sm:$0xff]
  %v344 = vld [vmem:[%s2 + $0x838] sm:$0xff]
  %v345 = vld [vmem:[%s2 + $0x840] sm:$0xff]
  %v346 = vld [vmem:[%s2 + $0x848] sm:$0xff]
  %v347 = vld [vmem:[%s2 + $0x850] sm:$0xff]
  %v348 = vld [vmem:[%s2 + $0x858] sm:$0xff]
  %v349 = vld [vmem:[%s2 + $0x860] sm:$0xff]
  %v350 = vld [vmem:[%s2 + $0x868] sm:$0xff]
  %v351 = vld [vmem:[%s2 + $0x870] sm:$0xff]
  %v352 = vld [vmem:[%s2 + $0x878] sm:$0xff]
  %v353 = vld [vmem:[%s2 + $0x880] sm:$0xff]
  %v354 = vld [vmem:[%s2 + $0x888] sm:$0xff]
  %v355 = vld [vmem:[%s2 + $0x890] sm:$0xff]
  %v356 = vld [vmem:[%s2 + $0x898] sm:$0xff]
  %v357 = vld [vmem:[%s2 + $0x8a0] sm:$0xff]
  %v358 = vld [vmem:[%s2 + $0x8a8] sm:$0xff]
  %v359 = vld [vmem:[%s2 + $0x8b0] sm:$0xff]
  %v360 = vld [vmem:[%s2 + $0x8b8] sm:$0xff]
  %v361 = vld [vmem:[%s2 + $0x8c0] sm:$0xff]
  %v362 = vld [vmem:[%s2 + $0x8c8] sm:$0xff]
  %v363 = vld [vmem:[%s2 + $0x8d0] sm:$0xff]
  %v364 = vld [vmem:[%s2 + $0x8d8] sm:$0xff]
  %v365 = vld [vmem:[%s2 + $0x8e0] sm:$0xff]
  %v366 = vld [vmem:[%s2 + $0x8e8] sm:$0xff]
  %v367 = vld [vmem:[%s2 + $0x8f0] sm:$0xff]
  %v368 = vld [vmem:[%s2 + $0x8f8] sm:$0xff]
  %v369 = vld [vmem:[%s2 + $0x900] sm:$0xff]
  %v370 = vld [vmem:[%s2 + $0x908] sm:$0xff]
  %v371 = vld [vmem:[%s2 + $0x910] sm:$0xff]
  %v372 = vld [vmem:[%s2 + $0x918] sm:$0xff]
  %v373 = vld [vmem:[%s2 + $0x920] sm:$0xff]
  %v374 = vld [vmem:[%s2 + $0x928] sm:$0xff]
  %v375 = vld [vmem:[%s2 + $0x930] sm:$0xff]
  %v376 = vld [vmem:[%s2 + $0x938] sm:$0xff]
  %v377 = vld [vmem:[%s2 + $0x940] sm:$0xff]
  %v378 = vld [vmem:[%s2 + $0x948] sm:$0xff]
  %v379 = vld [vmem:[%s2 + $0x950] sm:$0xff]
  %v380 = vld [vmem:[%s2 + $0x958] sm:$0xff]
  %v381 = vld [vmem:[%s2 + $0x960] sm:$0xff]
  %v382 = vld [vmem:[%s2 + $0x968] sm:$0xff]
  %v383 = vld [vmem:[%s2 + $0x970] sm:$0xff]
  %v384 = vld [vmem:[%s2 + $0x978] sm:$0xff]
  %v385 = vld [vmem:[%s2 + $0x980] sm:$0xff]
  %v386 = vld [vmem:[%s2 + $0x988] sm:$0xff]
  %v387 = vld [vmem:[%s2 + $0x990] sm:$0xff]
  %v388 = vld [vmem:[%s2 + $0x998] sm:$0xff]
  %v389 = vld [vmem:[%s2 + $0x9a0] sm:$0xff]
  %v390 = vld [vmem:[%s2 + $0x9a8] sm:$0xff]
  %v391 = vld [vmem:[%s2 + $0x9b0] sm:$0xff]
  %v392 = vld [vmem:[%s2 + $0x9b8] sm:$0xff]
  %v393 = vld [vmem:[%s2 + $0x9c0] sm:$0xff]
  %v394 = vld [vmem:[%s2 + $0x9c8] sm:$0xff]
  %v395 = vld [vmem:[%s2 + $0x9d0] sm:$0xff]
  %v396 = vld [vmem:[%s2 + $0x9d8] sm:$0xff]
  %v397 = vld [vmem:[%s2 + $0x9e0] sm:$0xff]
  %v398 = vld [vmem:[%s2 + $0x9e8] sm:$0xff]
  %v399 = vld [vmem:[%s2 + $0x9f0] sm:$0xff]
  %v400 = vld [vmem:[%s2 + $0x9f8] sm:$0xff]
  %v401 = vld [vmem:[%s2 + $0xa00] sm:$0xff]
  %v402 = vld [vmem:[%s2 + $0xa08] sm:$0xff]
  %v403 = vld [vmem:[%s2 + $0xa10] sm:$0xff]
  %v404 = vld [vmem:[%s2 + $0xa18] sm:$0xff]
  %v405 = vld [vmem:[%s2 + $0xa20] sm:$0xff]
  %v406 = vld [vmem:[%s2 + $0xa28] sm:$0xff]
  %v407 = vld [vmem:[%s2 + $0xa30] sm:$0xff]
  %v408 = vld [vmem:[%s2 + $0xa38] sm:$0xff]
  %v409 = vld [vmem:[%s2 + $0xa40] sm:$0xff]
  %v410 = vld [vmem:[%s2 + $0xa48] sm:$0xff]
  %v411 = vld [vmem:[%s2 + $0xa50] sm:$0xff]
  %v412 = vld [vmem:[%s2 + $0xa58] sm:$0xff]
  %v413 = vld [vmem:[%s2 + $0xa60] sm:$0xff]
  %v414 = vld [vmem:[%s2 + $0xa68] sm:$0xff]
  %v415 = vld [vmem:[%s2 + $0xa70] sm:$0xff]
  %v416 = vld [vmem:[%s2 + $0xa78] sm:$0xff]
  %v417 = vld [vmem:[%s2 + $0xa80] sm:$0xff]
  %v418 = vld [vmem:[%s2 + $0xa88] sm:$0xff]
  %v419 = vld [vmem:[%s2 + $0xa90] sm:$0xff]
  %v420 = vld [vmem:[%s2 + $0xa98] sm:$0xff]
  %v421 = vld [vmem:[%s2 + $0xaa0] sm:$0xff]
  %v422 = vld [vmem:[%s2 + $0xaa8] sm:$0xff]
  %v423 = vld [vmem:[%s2 + $0xab0] sm:$0xff]
  %v424 = vld [vmem:[%s2 + $0xab8] sm:$0xff]
  %v425 = vld [vmem:[%s2 + $0xac0] sm:$0xff]
  %v426 = vld [vmem:[%s2 + $0xac8] sm:$0xff]
  %v427 = vld [vmem:[%s2 + $0xad0] sm:$0xff]
  %v428 = vld [vmem:[%s2 + $0xad8] sm:$0xff]
  %v429 = vld [vmem:[%s2 + $0xae0] sm:$0xff]
  %v430 = vld [vmem:[%s2 + $0xae8] sm:$0xff]
  %v431 = vld [vmem:[%s2 + $0xaf0] sm:$0xff]
  %v432 = vld [vmem:[%s2 + $0xaf8] sm:$0xff]
  %v433 = vld [vmem:[%s2 + $0xb00] sm:$0xff]
  %v434 = vld [vmem:[%s2 + $0xb08] sm:$0xff]
  %v435 = vld [vmem:[%s2 + $0xb10] sm:$0xff]
  %v436 = vld [vmem:[%s2 + $0xb18] sm:$0xff]
  %v437 = vld [vmem:[%s2 + $0xb20] sm:$0xff]
  %v438 = vld [vmem:[%s2 + $0xb28] sm:$0xff]
  %v439 = vld [vmem:[%s2 + $0xb30] sm:$0xff]
  %v440 = vld [vmem:[%s2 + $0xb38] sm:$0xff]
  %v441 = vld [vmem:[%s2 + $0xb40] sm:$0xff]
  %v442 = vld [vmem:[%s2 + $0xb48] sm:$0xff]
  %v443 = vld [vmem:[%s2 + $0xb50] sm:$0xff]
  %v444 = vld [vmem:[%s2 + $0xb58] sm:$0xff]
  %v445 = vld [vmem:[%s2 + $0xb60] sm:$0xff]
  %v446 = vld [vmem:[%s2 + $0xb68] sm:$0xff]
  %v447 = vld [vmem:[%s2 + $0xb70] sm:$0xff]
  %v448 = vld [vmem:[%s2 + $0xb78] sm:$0xff]
  %v449 = vld [vmem:[%s2 + $0xb80] sm:$0xff]
  %v450 = vld [vmem:[%s2 + $0xb88] sm:$0xff]
  %v451 = vld [vmem:[%s2 + $0xb90] sm:$0xff]
  %v452 = vld [vmem:[%s2 + $0xb98] sm:$0xff]
  %v453 = vld [vmem:[%s2 + $0xba0] sm:$0xff]
  %v454 = vld [vmem:[%s2 + $0xba8] sm:$0xff]
  %v455 = vld [vmem:[%s2 + $0xbb0] sm:$0xff]
  %v456 = vld [vmem:[%s2 + $0xbb8] sm:$0xff]
  %v457 = vld [vmem:[%s2 + $0xbc0] sm:$0xff]
  %v458 = vld [vmem:[%s2 + $0xbc8] sm:$0xff]
  %v459 = vld [vmem:[%s2 + $0xbd0] sm:$0xff]
  %v460 = vld [vmem:[%s2 + $0xbd8] sm:$0xff]
  %v461 = vld [vmem:[%s2 + $0xbe0] sm:$0xff]
  %v462 = vld [vmem:[%s2 + $0xbe8] sm:$0xff]
  %v463 = vld [vmem:[%s2 + $0xbf0] sm:$0xff]
  %v464 = vld [vmem:[%s2 + $0xbf8] sm:$0xff]
  %v465 = vld [vmem:[%s3] sm:$0xff]
  %v466 = vld [vmem:[%s3 + $0x8] sm:$0xff]
  %v467 = vld [vmem:[%s3 + $0x10] sm:$0xff]
  %v468 = vld [vmem:[%s3 + $0x18] sm:$0xff]
  %v469 = vld [vmem:[%s3 + $0x20] sm:$0xff]
  %v470 = vld [vmem:[%s3 + $0x28] sm:$0xff]
  %v471 = vld [vmem:[%s3 + $0x30] sm:$0xff]
  %v472 = vld [vmem:[%s3 + $0x38] sm:$0xff]
  %v473 = vld [vmem:[%s3 + $0x40] sm:$0xff]
  %v474 = vld [vmem:[%s3 + $0x48] sm:$0xff]
  %v475 = vld [vmem:[%s3 + $0x50] sm:$0xff]
  %v476 = vld [vmem:[%s3 + $0x58] sm:$0xff]
  %v477 = vld [vmem:[%s3 + $0x60] sm:$0xff]
  %v478 = vld [vmem:[%s3 + $0x68] sm:$0xff]
  %v479 = vld [vmem:[%s3 + $0x70] sm:$0xff]
  %v480 = vld [vmem:[%s3 + $0x78] sm:$0xff]
  %v481 = vld [vmem:[%s3 + $0x80] sm:$0xff]
  %v482 = vld [vmem:[%s3 + $0x88] sm:$0xff]
  %v483 = vld [vmem:[%s3 + $0x90] sm:$0xff]
  %v484 = vld [vmem:[%s3 + $0x98] sm:$0xff]
  %v485 = vld [vmem:[%s3 + $0xa0] sm:$0xff]
  %v486 = vld [vmem:[%s3 + $0xa8] sm:$0xff]
  %v487 = vld [vmem:[%s3 + $0xb0] sm:$0xff]
  %v488 = vld [vmem:[%s3 + $0xb8] sm:$0xff]
  %v489 = vld [vmem:[%s3 + $0xc0] sm:$0xff]
  %v490 = vld [vmem:[%s3 + $0xc8] sm:$0xff]
  %v491 = vld [vmem:[%s3 + $0xd0] sm:$0xff]
  %v492 = vld [vmem:[%s3 + $0xd8] sm:$0xff]
  %v493 = vld [vmem:[%s3 + $0xe0] sm:$0xff]
  %v494 = vld [vmem:[%s3 + $0xe8] sm:$0xff]
  %v495 = vld [vmem:[%s3 + $0xf0] sm:$0xff]
  %v496 = vld [vmem:[%s3 + $0xf8] sm:$0xff]
  %v497 = vld [vmem:[%s4] sm:$0x3]
  %498 = vmatprep.subr.mxu0 %v82
  %499 = vmatpush1.msra.mxu0 %v81
  %500 = vmatprep.subr.mxu0 %v84
  %501 = vmatpush1.msra.mxu0 %v83
  %502 = vmatprep.subr.mxu0 %v86
  %503 = vmatpush1.msra.mxu0 %v85
  %504 = vmatprep.subr.mxu0 %v88
  %505 = vmatpush1.msra.mxu0 %v87
  %506 = vmatprep.subr.mxu0 %v90
  %507 = vmatpush1.msra.mxu0 %v89
  %508 = vmatprep.subr.mxu0 %v92
  %509 = vmatpush1.msra.mxu0 %v91
  %510 = vmatprep.subr.mxu0 %v94
  %511 = vmatpush1.msra.mxu0 %v93
  %512 = vmatprep.subr.mxu0 %v96
  %513 = vmatpush1.msra.mxu0 %v95
  %514 = vmatprep.subr.mxu0 %v98
  %515 = vmatpush1.msra.mxu0 %v97
  %516 = vmatprep.subr.mxu0 %v100
  %517 = vmatpush1.msra.mxu0 %v99
  %518 = vmatprep.subr.mxu0 %v102
  %519 = vmatpush1.msra.mxu0 %v101
  %520 = vmatprep.subr.mxu0 %v104
  %521 = vmatpush1.msra.mxu0 %v103
  %522 = vmatprep.subr.mxu0 %v106
  %523 = vmatpush1.msra.mxu0 %v105
  %524 = vmatprep.subr.mxu0 %v108
  %525 = vmatpush1.msra.mxu0 %v107
  %526 = vmatprep.subr.mxu0 %v110
  %527 = vmatpush1.msra.mxu0 %v109
  %528 = vmatprep.subr.mxu0 %v112
  %529 = vmatpush1.msra.mxu0 %v111
  %530 = vmatprep.subr.mxu0 %v114
  %531 = vmatpush1.msra.mxu0 %v113
  %532 = vmatprep.subr.mxu0 %v116
  %533 = vmatpush1.msra.mxu0 %v115
  %534 = vmatprep.subr.mxu0 %v118
  %535 = vmatpush1.msra.mxu0 %v117
  %536 = vmatprep.subr.mxu0 %v120
  %537 = vmatpush1.msra.mxu0 %v119
  %538 = vmatprep.subr.mxu0 %v122
  %539 = vmatpush1.msra.mxu0 %v121
  %540 = vmatprep.subr.mxu0 %v124
  %541 = vmatpush1.msra.mxu0 %v123
  %542 = vmatprep.subr.mxu0 %v126
  %543 = vmatpush1.msra.mxu0 %v125
  %544 = vmatprep.subr.mxu0 %v128
  %545 = vmatpush1.msra.mxu0 %v127
  %546 = vmatprep.subr.mxu0 %v130
  %547 = vmatpush1.msra.mxu0 %v129
  %548 = vmatprep.subr.mxu0 %v132
  %549 = vmatpush1.msra.mxu0 %v131
  %550 = vmatprep.subr.mxu0 %v134
  %551 = vmatpush1.msra.mxu0 %v133
  %552 = vmatprep.subr.mxu0 %v136
  %553 = vmatpush1.msra.mxu0 %v135
  %554 = vmatprep.subr.mxu0 %v138
  %555 = vmatpush1.msra.mxu0 %v137
  %556 = vmatprep.subr.mxu0 %v140
  %557 = vmatpush1.msra.mxu0 %v139
  %558 = vmatprep.subr.mxu0 %v142
  %559 = vmatpush1.msra.mxu0 %v141
  %560 = vmatprep.subr.mxu0 %v144
  %561 = vmatpush1.msra.mxu0 %v143
  %562 = vmatprep.mubr.f32.mxu0 %v34
  %563 = vmatmul.mubr.f32.gmra.mrb[0].mxu0 %v33
  %v564 = vpop.f32.mrb[0].mxu0
  %v565 = vadd.f32 0.0, %v564
  %v566 = vpop.f32.mrb[0].mxu0
  %v567 = vadd.f32 0.0, %v566
  %568 = vmatprep.mubr.f32.mxu0 %v46
  %569 = vmatmul.mubr.f32.gmra.mrb[0].mxu0 %v45
  %v570 = vpop.f32.mrb[0].mxu0
  %v571 = vadd.f32 0.0, %v570
  %v572 = vpop.f32.mrb[0].mxu0
  %v573 = vadd.f32 0.0, %v572
  %574 = vmatprep.mubr.f32.mxu0 %v58
  %575 = vmatmul.mubr.f32.gmra.mrb[0].mxu0 %v57
  %v576 = vpop.f32.mrb[0].mxu0
  %v577 = vadd.f32 0.0, %v576
  %v578 = vpop.f32.mrb[0].mxu0
  %v579 = vadd.f32 0.0, %v578
  %580 = vmatprep.mubr.f32.mxu0 %v70
  %581 = vmatmul.mubr.f32.gmra.mrb[0].mxu0 %v69
  %v582 = vpop.f32.mrb[0].mxu0
  %v583 = vadd.f32 0.0, %v582
  %v584 = vpop.f32.mrb[0].mxu0
  %v585 = vadd.f32 0.0, %v584
  %586 = vdwg.mxu0
  %587 = vmatprep.subr.mxu0 %v146
  %588 = vmatpush1.msra.mxu0 %v145
  %589 = vmatprep.subr.mxu0 %v148
  %590 = vmatpush1.msra.mxu0 %v147
  %591 = vmatprep.subr.mxu0 %v150
  %592 = vmatpush1.msra.mxu0 %v149
  %593 = vmatprep.subr.mxu0 %v152
  %594 = vmatpush1.msra.mxu0 %v151
  %595 = vmatprep.subr.mxu0 %v154
  %596 = vmatpush1.msra.mxu0 %v153
  %597 = vmatprep.subr.mxu0 %v156
  %598 = vmatpush1.msra.mxu0 %v155
  %599 = vmatprep.subr.mxu0 %v158
  %600 = vmatpush1.msra.mxu0 %v157
  %601 = vmatprep.subr.mxu0 %v160
  %602 = vmatpush1.msra.mxu0 %v159
  %603 = vmatprep.subr.mxu0 %v162
  %604 = vmatpush1.msra.mxu0 %v161
  %605 = vmatprep.subr.mxu0 %v164
  %606 = vmatpush1.msra.mxu0 %v163
  %607 = vmatprep.subr.mxu0 %v166
  %608 = vmatpush1.msra.mxu0 %v165
  %609 = vmatprep.subr.mxu0 %v168
  %610 = vmatpush1.msra.mxu0 %v167
  %611 = vmatprep.subr.mxu0 %v170
  %612 = vmatpush1.msra.mxu0 %v169
  %613 = vmatprep.subr.mxu0 %v172
  %614 = vmatpush1.msra.mxu0 %v171
  %615 = vmatprep.subr.mxu0 %v174
  %616 = vmatpush1.msra.mxu0 %v173
  %617 = vmatprep.subr.mxu0 %v176
  %618 = vmatpush1.msra.mxu0 %v175
  %619 = vmatprep.subr.mxu0 %v178
  %620 = vmatpush1.msra.mxu0 %v177
  %621 = vmatprep.subr.mxu0 %v180
  %622 = vmatpush1.msra.mxu0 %v179
  %623 = vmatprep.subr.mxu0 %v182
  %624 = vmatpush1.msra.mxu0 %v181
  %625 = vmatprep.subr.mxu0 %v184
  %626 = vmatpush1.msra.mxu0 %v183
  %627 = vmatprep.subr.mxu0 %v186
  %628 = vmatpush1.msra.mxu0 %v185
  %629 = vmatprep.subr.mxu0 %v188
  %630 = vmatpush1.msra.mxu0 %v187
  %631 = vmatprep.subr.mxu0 %v190
  %632 = vmatpush1.msra.mxu0 %v189
  %633 = vmatprep.subr.mxu0 %v192
  %634 = vmatpush1.msra.mxu0 %v191
  %635 = vmatprep.subr.mxu0 %v194
  %636 = vmatpush1.msra.mxu0 %v193
  %637 = vmatprep.subr.mxu0 %v196
  %638 = vmatpush1.msra.mxu0 %v195
  %639 = vmatprep.subr.mxu0 %v198
  %640 = vmatpush1.msra.mxu0 %v197
  %641 = vmatprep.subr.mxu0 %v200
  %642 = vmatpush1.msra.mxu0 %v199
  %643 = vmatprep.subr.mxu0 %v202
  %644 = vmatpush1.msra.mxu0 %v201
  %645 = vmatprep.subr.mxu0 %v204
  %646 = vmatpush1.msra.mxu0 %v203
  %647 = vmatprep.subr.mxu0 %v206
  %648 = vmatpush1.msra.mxu0 %v205
  %649 = vmatprep.subr.mxu0 %v208
  %650 = vmatpush1.msra.mxu0 %v207
  %651 = vmatprep.mubr.f32.mxu0 %v36
  %652 = vmatmul.mubr.f32.gmra.mrb[0].mxu0 %v35
  %v653 = vpop.f32.mrb[0].mxu0
  %v654 = vadd.f32 %v565, %v653
  %v655 = vpop.f32.mrb[0].mxu0
  %v656 = vadd.f32 %v567, %v655
  %657 = vmatprep.mubr.f32.mxu0 %v48
  %658 = vmatmul.mubr.f32.gmra.mrb[0].mxu0 %v47
  %v659 = vpop.f32.mrb[0].mxu0
  %v660 = vadd.f32 %v571, %v659
  %v661 = vpop.f32.mrb[0].mxu0
  %v662 = vadd.f32 %v573, %v661
  %663 = vmatprep.mubr.f32.mxu0 %v60
  %664 = vmatmul.mubr.f32.gmra.mrb[0].mxu0 %v59
  %v665 = vpop.f32.mrb[0].mxu0
  %v666 = vadd.f32 %v577, %v665
  %v667 = vpop.f32.mrb[0].mxu0
  %v668 = vadd.f32 %v579, %v667
  %669 = vmatprep.mubr.f32.mxu0 %v72
  %670 = vmatmul.mubr.f32.gmra.mrb[0].mxu0 %v71
  %v671 = vpop.f32.mrb[0].mxu0
  %v672 = vadd.f32 %v583, %v671
  %v673 = vpop.f32.mrb[0].mxu0
  %v674 = vadd.f32 %v585, %v673
  %675 = vdwg.mxu0
  %676 = vmatprep.subr.mxu0 %v210
  %677 = vmatpush1.msra.mxu0 %v209
  %678 = vmatprep.subr.mxu0 %v212
  %679 = vmatpush1.msra.mxu0 %v211
  %680 = vmatprep.subr.mxu0 %v214
  %681 = vmatpush1.msra.mxu0 %v213
  %682 = vmatprep.subr.mxu0 %v216
  %683 = vmatpush1.msra.mxu0 %v215
  %684 = vmatprep.subr.mxu0 %v218
  %685 = vmatpush1.msra.mxu0 %v217
  %686 = vmatprep.subr.mxu0 %v220
  %687 = vmatpush1.msra.mxu0 %v219
  %688 = vmatprep.subr.mxu0 %v222
  %689 = vmatpush1.msra.mxu0 %v221
  %690 = vmatprep.subr.mxu0 %v224
  %691 = vmatpush1.msra.mxu0 %v223
  %692 = vmatprep.subr.mxu0 %v226
  %693 = vmatpush1.msra.mxu0 %v225
  %694 = vmatprep.subr.mxu0 %v228
  %695 = vmatpush1.msra.mxu0 %v227
  %696 = vmatprep.subr.mxu0 %v230
  %697 = vmatpush1.msra.mxu0 %v229
  %698 = vmatprep.subr.mxu0 %v232
  %699 = vmatpush1.msra.mxu0 %v231
  %700 = vmatprep.subr.mxu0 %v234
  %701 = vmatpush1.msra.mxu0 %v233
  %702 = vmatprep.subr.mxu0 %v236
  %703 = vmatpush1.msra.mxu0 %v235
  %704 = vmatprep.subr.mxu0 %v238
  %705 = vmatpush1.msra.mxu0 %v237
  %706 = vmatprep.subr.mxu0 %v240
  %707 = vmatpush1.msra.mxu0 %v239
  %708 = vmatprep.subr.mxu0 %v242
  %709 = vmatpush1.msra.mxu0 %v241
  %710 = vmatprep.subr.mxu0 %v244
  %711 = vmatpush1.msra.mxu0 %v243
  %712 = vmatprep.subr.mxu0 %v246
  %713 = vmatpush1.msra.mxu0 %v245
  %714 = vmatprep.subr.mxu0 %v248
  %715 = vmatpush1.msra.mxu0 %v247
  %716 = vmatprep.subr.mxu0 %v250
  %717 = vmatpush1.msra.mxu0 %v249
  %718 = vmatprep.subr.mxu0 %v252
  %719 = vmatpush1.msra.mxu0 %v251
  %720 = vmatprep.subr.mxu0 %v254
  %721 = vmatpush1.msra.mxu0 %v253
  %722 = vmatprep.subr.mxu0 %v256
  %723 = vmatpush1.msra.mxu0 %v255
  %724 = vmatprep.subr.mxu0 %v258
  %725 = vmatpush1.msra.mxu0 %v257
  %726 = vmatprep.subr.mxu0 %v260
  %727 = vmatpush1.msra.mxu0 %v259
  %728 = vmatprep.subr.mxu0 %v262
  %729 = vmatpush1.msra.mxu0 %v261
  %730 = vmatprep.subr.mxu0 %v264
  %731 = vmatpush1.msra.mxu0 %v263
  %732 = vmatprep.subr.mxu0 %v266
  %733 = vmatpush1.msra.mxu0 %v265
  %734 = vmatprep.subr.mxu0 %v268
  %735 = vmatpush1.msra.mxu0 %v267
  %736 = vmatprep.subr.mxu0 %v270
  %737 = vmatpush1.msra.mxu0 %v269
  %738 = vmatprep.subr.mxu0 %v272
  %739 = vmatpush1.msra.mxu0 %v271
  %740 = vmatprep.mubr.f32.mxu0 %v38
  %741 = vmatmul.mubr.f32.gmra.mrb[0].mxu0 %v37
  %v742 = vpop.f32.mrb[0].mxu0
  %v743 = vadd.f32 %v654, %v742
  %v744 = vpop.f32.mrb[0].mxu0
  %v745 = vadd.f32 %v656, %v744
  %746 = vmatprep.mubr.f32.mxu0 %v50
  %747 = vmatmul.mubr.f32.gmra.mrb[0].mxu0 %v49
  %v748 = vpop.f32.mrb[0].mxu0
  %v749 = vadd.f32 %v660, %v748
  %v750 = vpop.f32.mrb[0].mxu0
  %v751 = vadd.f32 %v662, %v750
  %752 = vmatprep.mubr.f32.mxu0 %v62
  %753 = vmatmul.mubr.f32.gmra.mrb[0].mxu0 %v61
  %v754 = vpop.f32.mrb[0].mxu0
  %v755 = vadd.f32 %v666, %v754
  %v756 = vpop.f32.mrb[0].mxu0
  %v757 = vadd.f32 %v668, %v756
  %758 = vmatprep.mubr.f32.mxu0 %v74
  %759 = vmatmul.mubr.f32.gmra.mrb[0].mxu0 %v73
  %v760 = vpop.f32.mrb[0].mxu0
  %v761 = vadd.f32 %v672, %v760
  %v762 = vpop.f32.mrb[0].mxu0
  %v763 = vadd.f32 %v674, %v762
  %764 = vdwg.mxu0
  %765 = vmatprep.subr.mxu0 %v274
  %766 = vmatpush1.msra.mxu0 %v273
  %767 = vmatprep.subr.mxu0 %v276
  %768 = vmatpush1.msra.mxu0 %v275
  %769 = vmatprep.subr.mxu0 %v278
  %770 = vmatpush1.msra.mxu0 %v277
  %771 = vmatprep.subr.mxu0 %v280
  %772 = vmatpush1.msra.mxu0 %v279
  %773 = vmatprep.subr.mxu0 %v282
  %774 = vmatpush1.msra.mxu0 %v281
  %775 = vmatprep.subr.mxu0 %v284
  %776 = vmatpush1.msra.mxu0 %v283
  %777 = vmatprep.subr.mxu0 %v286
  %778 = vmatpush1.msra.mxu0 %v285
  %779 = vmatprep.subr.mxu0 %v288
  %780 = vmatpush1.msra.mxu0 %v287
  %781 = vmatprep.subr.mxu0 %v290
  %782 = vmatpush1.msra.mxu0 %v289
  %783 = vmatprep.subr.mxu0 %v292
  %784 = vmatpush1.msra.mxu0 %v291
  %785 = vmatprep.subr.mxu0 %v294
  %786 = vmatpush1.msra.mxu0 %v293
  %787 = vmatprep.subr.mxu0 %v296
  %788 = vmatpush1.msra.mxu0 %v295
  %789 = vmatprep.subr.mxu0 %v298
  %790 = vmatpush1.msra.mxu0 %v297
  %791 = vmatprep.subr.mxu0 %v300
  %792 = vmatpush1.msra.mxu0 %v299
  %793 = vmatprep.subr.mxu0 %v302
  %794 = vmatpush1.msra.mxu0 %v301
  %795 = vmatprep.subr.mxu0 %v304
  %796 = vmatpush1.msra.mxu0 %v303
  %797 = vmatprep.subr.mxu0 %v306
  %798 = vmatpush1.msra.mxu0 %v305
  %799 = vmatprep.subr.mxu0 %v308
  %800 = vmatpush1.msra.mxu0 %v307
  %801 = vmatprep.subr.mxu0 %v310
  %802 = vmatpush1.msra.mxu0 %v309
  %803 = vmatprep.subr.mxu0 %v312
  %804 = vmatpush1.msra.mxu0 %v311
  %805 = vmatprep.subr.mxu0 %v314
  %806 = vmatpush1.msra.mxu0 %v313
  %807 = vmatprep.subr.mxu0 %v316
  %808 = vmatpush1.msra.mxu0 %v315
  %809 = vmatprep.subr.mxu0 %v318
  %810 = vmatpush1.msra.mxu0 %v317
  %811 = vmatprep.subr.mxu0 %v320
  %812 = vmatpush1.msra.mxu0 %v319
  %813 = vmatprep.subr.mxu0 %v322
  %814 = vmatpush1.msra.mxu0 %v321
  %815 = vmatprep.subr.mxu0 %v324
  %816 = vmatpush1.msra.mxu0 %v323
  %817 = vmatprep.subr.mxu0 %v326
  %818 = vmatpush1.msra.mxu0 %v325
  %819 = vmatprep.subr.mxu0 %v328
  %820 = vmatpush1.msra.mxu0 %v327
  %821 = vmatprep.subr.mxu0 %v330
  %822 = vmatpush1.msra.mxu0 %v329
  %823 = vmatprep.subr.mxu0 %v332
  %824 = vmatpush1.msra.mxu0 %v331
  %825 = vmatprep.subr.mxu0 %v334
  %826 = vmatpush1.msra.mxu0 %v333
  %827 = vmatprep.subr.mxu0 %v336
  %828 = vmatpush1.msra.mxu0 %v335
  %829 = vmatprep.mubr.f32.mxu0 %v40
  %830 = vmatmul.mubr.f32.gmra.mrb[0].mxu0 %v39
  %v831 = vpop.f32.mrb[0].mxu0
  %v832 = vadd.f32 %v743, %v831
  %v833 = vpop.f32.mrb[0].mxu0
  %v834 = vadd.f32 %v745, %v833
  %835 = vmatprep.mubr.f32.mxu0 %v52
  %836 = vmatmul.mubr.f32.gmra.mrb[0].mxu0 %v51
  %v837 = vpop.f32.mrb[0].mxu0
  %v838 = vadd.f32 %v749, %v837
  %v839 = vpop.f32.mrb[0].mxu0
  %v840 = vadd.f32 %v751, %v839
  %841 = vmatprep.mubr.f32.mxu0 %v64
  %842 = vmatmul.mubr.f32.gmra.mrb[0].mxu0 %v63
  %v843 = vpop.f32.mrb[0].mxu0
  %v844 = vadd.f32 %v755, %v843
  %v845 = vpop.f32.mrb[0].mxu0
  %v846 = vadd.f32 %v757, %v845
  %847 = vmatprep.mubr.f32.mxu0 %v76
  %848 = vmatmul.mubr.f32.gmra.mrb[0].mxu0 %v75
  %v849 = vpop.f32.mrb[0].mxu0
  %v850 = vadd.f32 %v761, %v849
  %v851 = vpop.f32.mrb[0].mxu0
  %v852 = vadd.f32 %v763, %v851
  %853 = vdwg.mxu0
  %854 = vmatprep.subr.mxu0 %v338
  %855 = vmatpush1.msra.mxu0 %v337
  %856 = vmatprep.subr.mxu0 %v340
  %857 = vmatpush1.msra.mxu0 %v339
  %858 = vmatprep.subr.mxu0 %v342
  %859 = vmatpush1.msra.mxu0 %v341
  %860 = vmatprep.subr.mxu0 %v344
  %861 = vmatpush1.msra.mxu0 %v343
  %862 = vmatprep.subr.mxu0 %v346
  %863 = vmatpush1.msra.mxu0 %v345
  %864 = vmatprep.subr.mxu0 %v348
  %865 = vmatpush1.msra.mxu0 %v347
  %866 = vmatprep.subr.mxu0 %v350
  %867 = vmatpush1.msra.mxu0 %v349
  %868 = vmatprep.subr.mxu0 %v352
  %869 = vmatpush1.msra.mxu0 %v351
  %870 = vmatprep.subr.mxu0 %v354
  %871 = vmatpush1.msra.mxu0 %v353
  %872 = vmatprep.subr.mxu0 %v356
  %873 = vmatpush1.msra.mxu0 %v355
  %874 = vmatprep.subr.mxu0 %v358
  %875 = vmatpush1.msra.mxu0 %v357
  %876 = vmatprep.subr.mxu0 %v360
  %877 = vmatpush1.msra.mxu0 %v359
  %878 = vmatprep.subr.mxu0 %v362
  %879 = vmatpush1.msra.mxu0 %v361
  %880 = vmatprep.subr.mxu0 %v364
  %881 = vmatpush1.msra.mxu0 %v363
  %882 = vmatprep.subr.mxu0 %v366
  %883 = vmatpush1.msra.mxu0 %v365
  %884 = vmatprep.subr.mxu0 %v368
  %885 = vmatpush1.msra.mxu0 %v367
  %886 = vmatprep.subr.mxu0 %v370
  %887 = vmatpush1.msra.mxu0 %v369
  %888 = vmatprep.subr.mxu0 %v372
  %889 = vmatpush1.msra.mxu0 %v371
  %890 = vmatprep.subr.mxu0 %v374
  %891 = vmatpush1.msra.mxu0 %v373
  %892 = vmatprep.subr.mxu0 %v376
  %893 = vmatpush1.msra.mxu0 %v375
  %894 = vmatprep.subr.mxu0 %v378
  %895 = vmatpush1.msra.mxu0 %v377
  %896 = vmatprep.subr.mxu0 %v380
  %897 = vmatpush1.msra.mxu0 %v379
  %898 = vmatprep.subr.mxu0 %v382
  %899 = vmatpush1.msra.mxu0 %v381
  %900 = vmatprep.subr.mxu0 %v384
  %901 = vmatpush1.msra.mxu0 %v383
  %902 = vmatprep.subr.mxu0 %v386
  %903 = vmatpush1.msra.mxu0 %v385
  %904 = vmatprep.subr.mxu0 %v388
  %905 = vmatpush1.msra.mxu0 %v387
  %906 = vmatprep.subr.mxu0 %v390
  %907 = vmatpush1.msra.mxu0 %v389
  %908 = vmatprep.subr.mxu0 %v392
  %909 = vmatpush1.msra.mxu0 %v391
  %910 = vmatprep.subr.mxu0 %v394
  %911 = vmatpush1.msra.mxu0 %v393
  %912 = vmatprep.subr.mxu0 %v396
  %913 = vmatpush1.msra.mxu0 %v395
  %914 = vmatprep.subr.mxu0 %v398
  %915 = vmatpush1.msra.mxu0 %v397
  %916 = vmatprep.subr.mxu0 %v400
  %917 = vmatpush1.msra.mxu0 %v399
  %918 = vmatprep.mubr.f32.mxu0 %v42
  %919 = vmatmul.mubr.f32.gmra.mrb[0].mxu0 %v41
  %v920 = vpop.f32.mrb[0].mxu0
  %v921 = vadd.f32 %v832, %v920
  %v922 = vpop.f32.mrb[0].mxu0
  %v923 = vadd.f32 %v834, %v922
  %924 = vmatprep.mubr.f32.mxu0 %v54
  %925 = vmatmul.mubr.f32.gmra.mrb[0].mxu0 %v53
  %v926 = vpop.f32.mrb[0].mxu0
  %v927 = vadd.f32 %v838, %v926
  %v928 = vpop.f32.mrb[0].mxu0
  %v929 = vadd.f32 %v840, %v928
  %930 = vmatprep.mubr.f32.mxu0 %v66
  %931 = vmatmul.mubr.f32.gmra.mrb[0].mxu0 %v65
  %v932 = vpop.f32.mrb[0].mxu0
  %v933 = vadd.f32 %v844, %v932
  %v934 = vpop.f32.mrb[0].mxu0
  %v935 = vadd.f32 %v846, %v934
  %936 = vmatprep.mubr.f32.mxu0 %v78
  %937 = vmatmul.mubr.f32.gmra.mrb[0].mxu0 %v77
  %v938 = vpop.f32.mrb[0].mxu0
  %v939 = vadd.f32 %v850, %v938
  %v940 = vpop.f32.mrb[0].mxu0
  %v941 = vadd.f32 %v852, %v940
  %942 = vdwg.mxu0
  %943 = vmatprep.subr.mxu0 %v402
  %944 = vmatpush1.msra.mxu0 %v401
  %945 = vmatprep.subr.mxu0 %v404
  %946 = vmatpush1.msra.mxu0 %v403
  %947 = vmatprep.subr.mxu0 %v406
  %948 = vmatpush1.msra.mxu0 %v405
  %949 = vmatprep.subr.mxu0 %v408
  %950 = vmatpush1.msra.mxu0 %v407
  %951 = vmatprep.subr.mxu0 %v410
  %952 = vmatpush1.msra.mxu0 %v409
  %953 = vmatprep.subr.mxu0 %v412
  %954 = vmatpush1.msra.mxu0 %v411
  %955 = vmatprep.subr.mxu0 %v414
  %956 = vmatpush1.msra.mxu0 %v413
  %957 = vmatprep.subr.mxu0 %v416
  %958 = vmatpush1.msra.mxu0 %v415
  %959 = vmatprep.subr.mxu0 %v418
  %960 = vmatpush1.msra.mxu0 %v417
  %961 = vmatprep.subr.mxu0 %v420
  %962 = vmatpush1.msra.mxu0 %v419
  %963 = vmatprep.subr.mxu0 %v422
  %964 = vmatpush1.msra.mxu0 %v421
  %965 = vmatprep.subr.mxu0 %v424
  %966 = vmatpush1.msra.mxu0 %v423
  %967 = vmatprep.subr.mxu0 %v426
  %968 = vmatpush1.msra.mxu0 %v425
  %969 = vmatprep.subr.mxu0 %v428
  %970 = vmatpush1.msra.mxu0 %v427
  %971 = vmatprep.subr.mxu0 %v430
  %972 = vmatpush1.msra.mxu0 %v429
  %973 = vmatprep.subr.mxu0 %v432
  %974 = vmatpush1.msra.mxu0 %v431
  %975 = vmatprep.subr.mxu0 %v434
  %976 = vmatpush1.msra.mxu0 %v433
  %977 = vmatprep.subr.mxu0 %v436
  %978 = vmatpush1.msra.mxu0 %v435
  %979 = vmatprep.subr.mxu0 %v438
  %980 = vmatpush1.msra.mxu0 %v437
  %981 = vmatprep.subr.mxu0 %v440
  %982 = vmatpush1.msra.mxu0 %v439
  %983 = vmatprep.subr.mxu0 %v442
  %984 = vmatpush1.msra.mxu0 %v441
  %985 = vmatprep.subr.mxu0 %v444
  %986 = vmatpush1.msra.mxu0 %v443
  %987 = vmatprep.subr.mxu0 %v446
  %988 = vmatpush1.msra.mxu0 %v445
  %989 = vmatprep.subr.mxu0 %v448
  %990 = vmatpush1.msra.mxu0 %v447
  %991 = vmatprep.subr.mxu0 %v450
  %992 = vmatpush1.msra.mxu0 %v449
  %993 = vmatprep.subr.mxu0 %v452
  %994 = vmatpush1.msra.mxu0 %v451
  %995 = vmatprep.subr.mxu0 %v454
  %996 = vmatpush1.msra.mxu0 %v453
  %997 = vmatprep.subr.mxu0 %v456
  %998 = vmatpush1.msra.mxu0 %v455
  %999 = vmatprep.subr.mxu0 %v458
  %1000 = vmatpush1.msra.mxu0 %v457
  %1001 = vmatprep.subr.mxu0 %v460
  %1002 = vmatpush1.msra.mxu0 %v459
  %1003 = vmatprep.subr.mxu0 %v462
  %1004 = vmatpush1.msra.mxu0 %v461
  %1005 = vmatprep.subr.mxu0 %v464
  %1006 = vmatpush1.msra.mxu0 %v463
  %1007 = vmatprep.mubr.f32.mxu0 %v44
  %1008 = vmatmul.mubr.f32.gmra.mrb[0].mxu0 %v43
  %v1009 = vpop.f32.mrb[0].mxu0
  %v1010 = vadd.f32 %v921, %v1009
  %v1011 = vpop.f32.mrb[0].mxu0
  %v1012 = vadd.f32 %v923, %v1011
  %1013 = vmatprep.mubr.f32.mxu0 %v56
  %1014 = vmatmul.mubr.f32.gmra.mrb[0].mxu0 %v55
  %v1015 = vpop.f32.mrb[0].mxu0
  %v1016 = vadd.f32 %v927, %v1015
  %v1017 = vpop.f32.mrb[0].mxu0
  %v1018 = vadd.f32 %v929, %v1017
  %1019 = vmatprep.mubr.f32.mxu0 %v68
  %1020 = vmatmul.mubr.f32.gmra.mrb[0].mxu0 %v67
  %v1021 = vpop.f32.mrb[0].mxu0
  %v1022 = vadd.f32 %v933, %v1021
  %v1023 = vpop.f32.mrb[0].mxu0
  %v1024 = vadd.f32 %v935, %v1023
  %1025 = vmatprep.mubr.f32.mxu0 %v80
  %1026 = vmatmul.mubr.f32.gmra.mrb[0].mxu0 %v79
  %v1027 = vpop.f32.mrb[0].mxu0
  %v1028 = vadd.f32 %v939, %v1027
  %v1029 = vpop.f32.mrb[0].mxu0
  %v1030 = vadd.f32 %v941, %v1029
  %1031 = vdwg.mxu0
  %1032 = vmatprep.subr.mxu0 0.0
  %1033 = vmatpush1.msra.mxu0 %v465
  %1034 = vmatprep.subr.mxu0 0.0
  %1035 = vmatpush1.msra.mxu0 %v466
  %1036 = vmatprep.subr.mxu0 0.0
  %1037 = vmatpush1.msra.mxu0 %v467
  %1038 = vmatprep.subr.mxu0 0.0
  %1039 = vmatpush1.msra.mxu0 %v468
  %1040 = vmatprep.subr.mxu0 0.0
  %1041 = vmatpush1.msra.mxu0 %v469
  %1042 = vmatprep.subr.mxu0 0.0
  %1043 = vmatpush1.msra.mxu0 %v470
  %1044 = vmatprep.subr.mxu0 0.0
  %1045 = vmatpush1.msra.mxu0 %v471
  %1046 = vmatprep.subr.mxu0 0.0
  %1047 = vmatpush1.msra.mxu0 %v472
  %1048 = vmatprep.subr.mxu0 0.0
  %1049 = vmatpush1.msra.mxu0 %v473
  %1050 = vmatprep.subr.mxu0 0.0
  %1051 = vmatpush1.msra.mxu0 %v474
  %1052 = vmatprep.subr.mxu0 0.0
  %1053 = vmatpush1.msra.mxu0 %v475
  %1054 = vmatprep.subr.mxu0 0.0
  %1055 = vmatpush1.msra.mxu0 %v476
  %1056 = vmatprep.subr.mxu0 0.0
  %1057 = vmatpush1.msra.mxu0 %v477
  %1058 = vmatprep.subr.mxu0 0.0
  %1059 = vmatpush1.msra.mxu0 %v478
  %1060 = vmatprep.subr.mxu0 0.0
  %1061 = vmatpush1.msra.mxu0 %v479
  %1062 = vmatprep.subr.mxu0 0.0
  %1063 = vmatpush1.msra.mxu0 %v480
  %1064 = vmatprep.subr.mxu0 0.0
  %1065 = vmatpush1.msra.mxu0 %v481
  %1066 = vmatprep.subr.mxu0 0.0
  %1067 = vmatpush1.msra.mxu0 %v482
  %1068 = vmatprep.subr.mxu0 0.0
  %1069 = vmatpush1.msra.mxu0 %v483
  %1070 = vmatprep.subr.mxu0 0.0
  %1071 = vmatpush1.msra.mxu0 %v484
  %1072 = vmatprep.subr.mxu0 0.0
  %1073 = vmatpush1.msra.mxu0 %v485
  %1074 = vmatprep.subr.mxu0 0.0
  %1075 = vmatpush1.msra.mxu0 %v486
  %1076 = vmatprep.subr.mxu0 0.0
  %1077 = vmatpush1.msra.mxu0 %v487
  %1078 = vmatprep.subr.mxu0 0.0
  %1079 = vmatpush1.msra.mxu0 %v488
  %1080 = vmatprep.subr.mxu0 0.0
  %1081 = vmatpush1.msra.mxu0 %v489
  %1082 = vmatprep.subr.mxu0 0.0
  %1083 = vmatpush1.msra.mxu0 %v490
  %1084 = vmatprep.subr.mxu0 0.0
  %1085 = vmatpush1.msra.mxu0 %v491
  %1086 = vmatprep.subr.mxu0 0.0
  %1087 = vmatpush1.msra.mxu0 %v492
  %1088 = vmatprep.subr.mxu0 0.0
  %1089 = vmatpush1.msra.mxu0 %v493
  %1090 = vmatprep.subr.mxu0 0.0
  %1091 = vmatpush1.msra.mxu0 %v494
  %1092 = vmatprep.subr.mxu0 0.0
  %1093 = vmatpush1.msra.mxu0 %v495
  %1094 = vmatprep.subr.mxu0 0.0
  %1095 = vmatpush1.msra.mxu0 %v496
  %1096 = vmatprep.mubr.f32.mxu0 %v1012
  %1097 = vmatmul.mubr.f32.gmra.mrb[0].mxu0 %v1010
  %v1098 = vpop.f32.mrb[0].mxu0
  %v1099 = vadd.f32 0.0, %v1098
  %v1100 = vpop.f32.mrb[0].mxu0
  %1101 = vmatprep.mubr.f32.mxu0 %v1018
  %1102 = vmatmul.mubr.f32.gmra.mrb[0].mxu0 %v1016
  %v1103 = vpop.f32.mrb[0].mxu0
  %v1104 = vadd.f32 0.0, %v1103
  %v1105 = vpop.f32.mrb[0].mxu0
  %1106 = vmatprep.mubr.f32.mxu0 %v1024
  %1107 = vmatmul.mubr.f32.gmra.mrb[0].mxu0 %v1022
  %v1108 = vpop.f32.mrb[0].mxu0
  %v1109 = vadd.f32 0.0, %v1108
  %v1110 = vpop.f32.mrb[0].mxu0
  %1111 = vmatprep.mubr.f32.mxu0 %v1030
  %1112 = vmatmul.mubr.f32.gmra.mrb[0].mxu0 %v1028
  %v1113 = vpop.f32.mrb[0].mxu0
  %v1114 = vadd.f32 0.0, %v1113
  %v1115 = vpop.f32.mrb[0].mxu0
  %1116 = vdwg.mxu0
  %1121 = vrot.lane.b32.xlu0 %v1099, 127
  %v1122 = vpop.permute.xlu0 %1121
  %1123 = vrot.lane.b32.xlu0 %v1104, 127
  %v1124 = vpop.permute.xlu0 %1123
  %1125 = vrot.lane.b32.xlu0 %v1109, 127
  %v1126 = vpop.permute.xlu0 %1125
  %1127 = vrot.lane.b32.xlu0 %v1114, 127
  %v1128 = vpop.permute.xlu0 %1127
  %1133 = vxpose.xlu0.b32.start [1/16] %v1122, 128
  %1134 = vxpose.xlu0.b32.cont [2/16] %v1124, 128
  %1135 = vxpose.xlu0.b32.cont [3/16] %v1126, 128
  %1136 = vxpose.xlu0.b32.cont [4/16] %v1128, 128
  %1137 = vxpose.xlu0.b32.cont [5/16] 0.0, 128
  %1138 = vxpose.xlu0.b32.cont [6/16] 0.0, 128
  %1139 = vxpose.xlu0.b32.cont [7/16] 0.0, 128
  %1140 = vxpose.xlu0.b32.cont [8/16] 0.0, 128
  %1141 = vxpose.xlu0.b32.cont [9/16] 0.0, 128
  %1142 = vxpose.xlu0.b32.cont [10/16] 0.0, 128
  %1143 = vxpose.xlu0.b32.cont [11/16] 0.0, 128
  %1144 = vxpose.xlu0.b32.cont [12/16] 0.0, 128
  %1145 = vxpose.xlu0.b32.cont [13/16] 0.0, 128
  %1146 = vxpose.xlu0.b32.cont [14/16] 0.0, 128
  %1147 = vxpose.xlu0.b32.cont [15/16] 0.0, 128
  %1148 = vxpose.xlu0.b32.end [16/16] 0.0, 128
  %v1149 = vpop.trf.xlu0
  %v1150 = vpop.trf.xlu0
  %v1151 = vpop.trf.xlu0
  %v1152 = vpop.trf.xlu0
  %v1153 = vpop.trf.xlu0
  %v1154 = vpop.trf.xlu0
  %v1155 = vpop.trf.xlu0
  %v1156 = vpop.trf.xlu0
  %v1157 = vpop.trf.xlu0
  %v1158 = vpop.trf.xlu0
  %v1159 = vpop.trf.xlu0
  %v1160 = vpop.trf.xlu0
  %v1161 = vpop.trf.xlu0
  %v1162 = vpop.trf.xlu0
  %v1163 = vpop.trf.xlu0
  %v1164 = vpop.trf.xlu0
  %1165 = vset.pattern.permute.xlu0 0
  %1166 = vperm.xlu0 %1165, %v1099
  %v1167 = vpop.permute.xlu0 %1166
  %1169 = vset.pattern.permute.xlu0 0
  %1170 = vperm.xlu0 %1169, %v1104
  %v1171 = vpop.permute.xlu0 %1170
  %1173 = vset.pattern.permute.xlu0 0
  %1174 = vperm.xlu0 %1173, %v1109
  %v1175 = vpop.permute.xlu0 %1174
  %1177 = vset.pattern.permute.xlu0 0
  %1178 = vperm.xlu0 %1177, %v1114
  %v1179 = vpop.permute.xlu0 %1178
  %v1181 = vlaneseq
  %v1182 = vshrl.u32 %v1181, 7
  %v1183 = vsub.s32 0, %v1182
  %v1184 = vrot.slane %v1149, %v1183
  %v1185 = vadd.f32 %v1167, %v1184
  %v1186 = vadd.f32 %v1171, %v1184
  %v1187 = vadd.f32 %v1175, %v1184
  %v1188 = vadd.f32 %v1179, %v1184
  %vm1189 = vcmp.ge.f32.partialorder %v1185, 0.0
  %vm1190 = vcmp.ge.f32.partialorder %v1186, 0.0
  %vm1191 = vcmp.ge.f32.partialorder %v1187, 0.0
  %vm1192 = vcmp.ge.f32.partialorder %v1188, 0.0
  %v1193 = vmul.f32 %v1185, 0.2
  %v1194 = vmul.f32 %v1186, 0.2
  %v1195 = vmul.f32 %v1187, 0.2
  %v1196 = vmul.f32 %v1188, 0.2
  %v1197 = vsel %vm1189, %v1185, %v1193
  %v1198 = vsel %vm1190, %v1186, %v1194
  %v1199 = vsel %vm1191, %v1187, %v1195
  %v1200 = vsel %vm1192, %v1188, %v1196
  %v1201 = vmul.f32 %v1197, 1.442695
  %v1202 = vpow.pop %v1201
  %v1203 = vmul.f32 %v1198, 1.442695
  %v1204 = vpow.pop %v1203
  %v1205 = vmul.f32 %v1199, 1.442695
  %v1206 = vpow.pop %v1205
  %v1207 = vmul.f32 %v1200, 1.442695
  %v1208 = vpow.pop %v1207
  %v1209 = vmul.f32 %v29, %v1202
  %v1210 = vmul.f32 %v30, %v1204
  %v1211 = vmul.f32 %v31, %v1206
  %v1212 = vmul.f32 %v32, %v1208
  %vm1213 = vcmask 261120
  %v1214 = vsel %vm1213, %v1209, 0.0
  %1215 = vadd.xlane.f32.xlu0 %v1214
  %v1216 = vpop.xlane.xlu0 %1215
  %v1217 = vsel %vm1213, %v1210, 0.0
  %1218 = vadd.xlane.f32.xlu0 %v1217
  %v1219 = vpop.xlane.xlu0 %1218
  %v1220 = vsel %vm1213, %v1211, 0.0
  %1221 = vadd.xlane.f32.xlu0 %v1220
  %v1222 = vpop.xlane.xlu0 %1221
  %v1223 = vsel %vm1213, %v1212, 0.0
  %1224 = vadd.xlane.f32.xlu0 %v1223
  %v1225 = vpop.xlane.xlu0 %1224
  %v1226 = vadd.f32 %v1216, 0.001
  %v1227 = vadd.f32 %v1219, 0.001
  %v1228 = vadd.f32 %v1222, 0.001
  %v1229 = vadd.f32 %v1225, 0.001
  %v1230 = vrcp.pop %v1226
  %v1231 = vmul.f32 %v1209, %v1230
  %v1232 = vrcp.pop %v1227
  %v1233 = vmul.f32 %v1210, %v1232
  %v1234 = vrcp.pop %v1228
  %v1235 = vmul.f32 %v1211, %v1234
  %v1236 = vrcp.pop %v1229
  %v1237 = vmul.f32 %v1212, %v1236
  %v1239 = vlaneseq
  %v1240 = vshrl.u32 %v1239, 7
  %v1241 = vsub.s32 0, %v1240
  %v1242 = vrot.slane %v497, %v1241
  %v1243 = vlaneseq
  %v1244 = vshrl.u32 %v1243, 7
  %v1245 = vsub.s32 1, %v1244
  %v1246 = vrot.slane %v497, %v1245
  %v1250 = vsel %vm1213, %v1231, 0
  %v1253 = vsel %vm1213, %v1233, 0
  %v1256 = vsel %vm1213, %v1235, 0
  %v1259 = vsel %vm1213, %v1237, 0
  %1261 = vmatprep.subr.mxu0 %v1012
  %1262 = vmatpush1.msra.mxu0 %v1010
  %1263 = vmatprep.subr.mxu0 %v1018
  %1264 = vmatpush1.msra.mxu0 %v1016
  %1265 = vmatprep.subr.mxu0 %v1024
  %1266 = vmatpush1.msra.mxu0 %v1022
  %1267 = vmatprep.subr.mxu0 %v1030
  %1268 = vmatpush1.msra.mxu0 %v1028
  %1269 = vmatprep.subr.mxu0 0.0
  %1270 = vmatpush1.msra.mxu0 0.0
  %1271 = vmatprep.subr.mxu0 0.0
  %1272 = vmatpush1.msra.mxu0 0.0
  %1273 = vmatprep.subr.mxu0 0.0
  %1274 = vmatpush1.msra.mxu0 0.0
  %1275 = vmatprep.subr.mxu0 0.0
  %1276 = vmatpush1.msra.mxu0 0.0
  %1277 = vmatprep.subr.mxu0 0.0
  %1278 = vmatpush1.msra.mxu0 0.0
  %1279 = vmatprep.subr.mxu0 0.0
  %1280 = vmatpush1.msra.mxu0 0.0
  %1281 = vmatprep.subr.mxu0 0.0
  %1282 = vmatpush1.msra.mxu0 0.0
  %1283 = vmatprep.subr.mxu0 0.0
  %1284 = vmatpush1.msra.mxu0 0.0
  %1285 = vmatprep.subr.mxu0 0.0
  %1286 = vmatpush1.msra.mxu0 0.0
  %1287 = vmatprep.subr.mxu0 0.0
  %1288 = vmatpush1.msra.mxu0 0.0
  %1289 = vmatprep.subr.mxu0 0.0
  %1290 = vmatpush1.msra.mxu0 0.0
  %1291 = vmatprep.subr.mxu0 0.0
  %1292 = vmatpush1.msra.mxu0 0.0
  %1293 = vmatprep.subr.mxu0 0.0
  %1294 = vmatpush1.msra.mxu0 0.0
  %1295 = vmatprep.subr.mxu0 0.0
  %1296 = vmatpush1.msra.mxu0 0.0
  %1297 = vmatprep.subr.mxu0 0.0
  %1298 = vmatpush1.msra.mxu0 0.0
  %1299 = vmatprep.subr.mxu0 0.0
  %1300 = vmatpush1.msra.mxu0 0.0
  %1301 = vmatprep.subr.mxu0 0.0
  %1302 = vmatpush1.msra.mxu0 0.0
  %1303 = vmatprep.subr.mxu0 0.0
  %1304 = vmatpush1.msra.mxu0 0.0
  %1305 = vmatprep.subr.mxu0 0.0
  %1306 = vmatpush1.msra.mxu0 0.0
  %1307 = vmatprep.subr.mxu0 0.0
  %1308 = vmatpush1.msra.mxu0 0.0
  %1309 = vmatprep.subr.mxu0 0.0
  %1310 = vmatpush1.msra.mxu0 0.0
  %1311 = vmatprep.subr.mxu0 0.0
  %1312 = vmatpush1.msra.mxu0 0.0
  %1313 = vmatprep.subr.mxu0 0.0
  %1314 = vmatpush1.msra.mxu0 0.0
  %1315 = vmatprep.subr.mxu0 0.0
  %1316 = vmatpush1.msra.mxu0 0.0
  %1317 = vmatprep.subr.mxu0 0.0
  %1318 = vmatpush1.msra.mxu0 0.0
  %1319 = vmatprep.subr.mxu0 0.0
  %1320 = vmatpush1.msra.mxu0 0.0
  %1321 = vmatprep.subr.mxu0 0.0
  %1322 = vmatpush1.msra.mxu0 0.0
  %1323 = vmatprep.subr.mxu0 0.0
  %1324 = vmatpush1.msra.mxu0 0.0
  %1325 = vmatprep.mubr.f32.mxu0 0.0
  %1326 = vmatmul.mubr.f32.gmra.mrb[0].mxu0 %v1250
  %v1327 = vpop.f32.mrb[0].mxu0
  %v1328 = vadd.f32 %v1242, %v1327
  %v1329 = vpop.f32.mrb[0].mxu0
  %v1330 = vadd.f32 %v1246, %v1329
  %1331 = vmatprep.mubr.f32.mxu0 0.0
  %1332 = vmatmul.mubr.f32.gmra.mrb[0].mxu0 %v1253
  %v1333 = vpop.f32.mrb[0].mxu0
  %v1334 = vadd.f32 %v1242, %v1333
  %v1335 = vpop.f32.mrb[0].mxu0
  %v1336 = vadd.f32 %v1246, %v1335
  %1337 = vmatprep.mubr.f32.mxu0 0.0
  %1338 = vmatmul.mubr.f32.gmra.mrb[0].mxu0 %v1256
  %v1339 = vpop.f32.mrb[0].mxu0
  %v1340 = vadd.f32 %v1242, %v1339
  %v1341 = vpop.f32.mrb[0].mxu0
  %v1342 = vadd.f32 %v1246, %v1341
  %1343 = vmatprep.mubr.f32.mxu0 0.0
  %1344 = vmatmul.mubr.f32.gmra.mrb[0].mxu0 %v1259
  %v1345 = vpop.f32.mrb[0].mxu0
  %v1346 = vadd.f32 %v1242, %v1345
  %v1347 = vpop.f32.mrb[0].mxu0
  %v1348 = vadd.f32 %v1246, %v1347
  %1349 = vdwg.mxu0
  %v1350 = vmax.f32 %v1328, 0.0
  %v1351 = vmax.f32 %v1330, 0.0
  %v1352 = vmax.f32 %v1334, 0.0
  %v1353 = vmax.f32 %v1336, 0.0
  %v1354 = vmax.f32 %v1340, 0.0
  %v1355 = vmax.f32 %v1342, 0.0
  %v1356 = vmax.f32 %v1346, 0.0
  %v1357 = vmax.f32 %v1348, 0.0
  %v1358 = vld [vmem:[%s5] sm:$0xff]
  %v1359 = vld [vmem:[%s5 + $0x8] sm:$0xff]
  %v1360 = vld [vmem:[%s5 + $0x10] sm:$0xff]
  %v1361 = vld [vmem:[%s5 + $0x18] sm:$0xff]
  %v1362 = vld [vmem:[%s5 + $0x20] sm:$0xff]
  %v1363 = vld [vmem:[%s5 + $0x28] sm:$0xff]
  %v1364 = vld [vmem:[%s5 + $0x30] sm:$0xff]
  %v1365 = vld [vmem:[%s5 + $0x38] sm:$0xff]
  %v1366 = vld [vmem:[%s5 + $0x40] sm:$0xff]
  %v1367 = vld [vmem:[%s5 + $0x48] sm:$0xff]
  %v1368 = vld [vmem:[%s5 + $0x50] sm:$0xff]
  %v1369 = vld [vmem:[%s5 + $0x58] sm:$0xff]
  %v1370 = vld [vmem:[%s5 + $0x60] sm:$0xff]
  %v1371 = vld [vmem:[%s5 + $0x68] sm:$0xff]
  %v1372 = vld [vmem:[%s5 + $0x70] sm:$0xff]
  %v1373 = vld [vmem:[%s5 + $0x78] sm:$0xff]
  %v1374 = vld [vmem:[%s5 + $0x80] sm:$0xff]
  %v1375 = vld [vmem:[%s5 + $0x88] sm:$0xff]
  %v1376 = vld [vmem:[%s5 + $0x90] sm:$0xff]
  %v1377 = vld [vmem:[%s5 + $0x98] sm:$0xff]
  %v1378 = vld [vmem:[%s5 + $0xa0] sm:$0xff]
  %v1379 = vld [vmem:[%s5 + $0xa8] sm:$0xff]
  %v1380 = vld [vmem:[%s5 + $0xb0] sm:$0xff]
  %v1381 = vld [vmem:[%s5 + $0xb8] sm:$0xff]
  %v1382 = vld [vmem:[%s5 + $0xc0] sm:$0xff]
  %v1383 = vld [vmem:[%s5 + $0xc8] sm:$0xff]
  %v1384 = vld [vmem:[%s5 + $0xd0] sm:$0xff]
  %v1385 = vld [vmem:[%s5 + $0xd8] sm:$0xff]
  %v1386 = vld [vmem:[%s5 + $0xe0] sm:$0xff]
  %v1387 = vld [vmem:[%s5 + $0xe8] sm:$0xff]
  %v1388 = vld [vmem:[%s5 + $0xf0] sm:$0xff]
  %v1389 = vld [vmem:[%s5 + $0xf8] sm:$0xff]
  %v1390 = vld [vmem:[%s6] sm:$0xff]
  %v1391 = vld [vmem:[%s6 + $0x8] sm:$0xff]
  %v1392 = vld [vmem:[%s6 + $0x10] sm:$0xff]
  %v1393 = vld [vmem:[%s6 + $0x18] sm:$0xff]
  %v1394 = vld [vmem:[%s6 + $0x20] sm:$0xff]
  %v1395 = vld [vmem:[%s6 + $0x28] sm:$0xff]
  %v1396 = vld [vmem:[%s6 + $0x30] sm:$0xff]
  %v1397 = vld [vmem:[%s6 + $0x38] sm:$0xff]
  %v1398 = vld [vmem:[%s6 + $0x40] sm:$0xff]
  %v1399 = vld [vmem:[%s6 + $0x48] sm:$0xff]
  %v1400 = vld [vmem:[%s6 + $0x50] sm:$0xff]
  %v1401 = vld [vmem:[%s6 + $0x58] sm:$0xff]
  %v1402 = vld [vmem:[%s6 + $0x60] sm:$0xff]
  %v1403 = vld [vmem:[%s6 + $0x68] sm:$0xff]
  %v1404 = vld [vmem:[%s6 + $0x70] sm:$0xff]
  %v1405 = vld [vmem:[%s6 + $0x78] sm:$0xff]
  %v1406 = vld [vmem:[%s7] sm:$0x1]
  %1407 = vmatprep.subr.mxu0 0.0
  %1408 = vmatpush1.msra.mxu0 %v1358
  %1409 = vmatprep.subr.mxu0 0.0
  %1410 = vmatpush1.msra.mxu0 %v1359
  %1411 = vmatprep.subr.mxu0 0.0
  %1412 = vmatpush1.msra.mxu0 %v1360
  %1413 = vmatprep.subr.mxu0 0.0
  %1414 = vmatpush1.msra.mxu0 %v1361
  %1415 = vmatprep.subr.mxu0 0.0
  %1416 = vmatpush1.msra.mxu0 %v1362
  %1417 = vmatprep.subr.mxu0 0.0
  %1418 = vmatpush1.msra.mxu0 %v1363
  %1419 = vmatprep.subr.mxu0 0.0
  %1420 = vmatpush1.msra.mxu0 %v1364
  %1421 = vmatprep.subr.mxu0 0.0
  %1422 = vmatpush1.msra.mxu0 %v1365
  %1423 = vmatprep.subr.mxu0 0.0
  %1424 = vmatpush1.msra.mxu0 %v1366
  %1425 = vmatprep.subr.mxu0 0.0
  %1426 = vmatpush1.msra.mxu0 %v1367
  %1427 = vmatprep.subr.mxu0 0.0
  %1428 = vmatpush1.msra.mxu0 %v1368
  %1429 = vmatprep.subr.mxu0 0.0
  %1430 = vmatpush1.msra.mxu0 %v1369
  %1431 = vmatprep.subr.mxu0 0.0
  %1432 = vmatpush1.msra.mxu0 %v1370
  %1433 = vmatprep.subr.mxu0 0.0
  %1434 = vmatpush1.msra.mxu0 %v1371
  %1435 = vmatprep.subr.mxu0 0.0
  %1436 = vmatpush1.msra.mxu0 %v1372
  %1437 = vmatprep.subr.mxu0 0.0
  %1438 = vmatpush1.msra.mxu0 %v1373
  %1439 = vmatprep.subr.mxu0 0.0
  %1440 = vmatpush1.msra.mxu0 %v1374
  %1441 = vmatprep.subr.mxu0 0.0
  %1442 = vmatpush1.msra.mxu0 %v1375
  %1443 = vmatprep.subr.mxu0 0.0
  %1444 = vmatpush1.msra.mxu0 %v1376
  %1445 = vmatprep.subr.mxu0 0.0
  %1446 = vmatpush1.msra.mxu0 %v1377
  %1447 = vmatprep.subr.mxu0 0.0
  %1448 = vmatpush1.msra.mxu0 %v1378
  %1449 = vmatprep.subr.mxu0 0.0
  %1450 = vmatpush1.msra.mxu0 %v1379
  %1451 = vmatprep.subr.mxu0 0.0
  %1452 = vmatpush1.msra.mxu0 %v1380
  %1453 = vmatprep.subr.mxu0 0.0
  %1454 = vmatpush1.msra.mxu0 %v1381
  %1455 = vmatprep.subr.mxu0 0.0
  %1456 = vmatpush1.msra.mxu0 %v1382
  %1457 = vmatprep.subr.mxu0 0.0
  %1458 = vmatpush1.msra.mxu0 %v1383
  %1459 = vmatprep.subr.mxu0 0.0
  %1460 = vmatpush1.msra.mxu0 %v1384
  %1461 = vmatprep.subr.mxu0 0.0
  %1462 = vmatpush1.msra.mxu0 %v1385
  %1463 = vmatprep.subr.mxu0 0.0
  %1464 = vmatpush1.msra.mxu0 %v1386
  %1465 = vmatprep.subr.mxu0 0.0
  %1466 = vmatpush1.msra.mxu0 %v1387
  %1467 = vmatprep.subr.mxu0 0.0
  %1468 = vmatpush1.msra.mxu0 %v1388
  %1469 = vmatprep.subr.mxu0 0.0
  %1470 = vmatpush1.msra.mxu0 %v1389
  %1471 = vmatprep.mubr.f32.mxu0 %v1351
  %1472 = vmatmul.mubr.f32.gmra.mrb[0].mxu0 %v1350
  %v1473 = vpop.f32.mrb[0].mxu0
  %v1474 = vadd.f32 0.0, %v1473
  %v1475 = vpop.f32.mrb[0].mxu0
  %1476 = vmatprep.mubr.f32.mxu0 %v1353
  %1477 = vmatmul.mubr.f32.gmra.mrb[0].mxu0 %v1352
  %v1478 = vpop.f32.mrb[0].mxu0
  %v1479 = vadd.f32 0.0, %v1478
  %v1480 = vpop.f32.mrb[0].mxu0
  %1481 = vmatprep.mubr.f32.mxu0 %v1355
  %1482 = vmatmul.mubr.f32.gmra.mrb[0].mxu0 %v1354
  %v1483 = vpop.f32.mrb[0].mxu0
  %v1484 = vadd.f32 0.0, %v1483
  %v1485 = vpop.f32.mrb[0].mxu0
  %1486 = vmatprep.mubr.f32.mxu0 %v1357
  %1487 = vmatmul.mubr.f32.gmra.mrb[0].mxu0 %v1356
  %v1488 = vpop.f32.mrb[0].mxu0
  %v1489 = vadd.f32 0.0, %v1488
  %v1490 = vpop.f32.mrb[0].mxu0
  %1491 = vdwg.mxu0
  %1492 = vmatprep.subr.mxu0 0.0
  %1493 = vmatpush1.msra.mxu0 %v1390
  %1494 = vmatprep.subr.mxu0 0.0
  %1495 = vmatpush1.msra.mxu0 %v1391
  %1496 = vmatprep.subr.mxu0 0.0
  %1497 = vmatpush1.msra.mxu0 %v1392
  %1498 = vmatprep.subr.mxu0 0.0
  %1499 = vmatpush1.msra.mxu0 %v1393
  %1500 = vmatprep.subr.mxu0 0.0
  %1501 = vmatpush1.msra.mxu0 %v1394
  %1502 = vmatprep.subr.mxu0 0.0
  %1503 = vmatpush1.msra.mxu0 %v1395
  %1504 = vmatprep.subr.mxu0 0.0
  %1505 = vmatpush1.msra.mxu0 %v1396
  %1506 = vmatprep.subr.mxu0 0.0
  %1507 = vmatpush1.msra.mxu0 %v1397
  %1508 = vmatprep.subr.mxu0 0.0
  %1509 = vmatpush1.msra.mxu0 %v1398
  %1510 = vmatprep.subr.mxu0 0.0
  %1511 = vmatpush1.msra.mxu0 %v1399
  %1512 = vmatprep.subr.mxu0 0.0
  %1513 = vmatpush1.msra.mxu0 %v1400
  %1514 = vmatprep.subr.mxu0 0.0
  %1515 = vmatpush1.msra.mxu0 %v1401
  %1516 = vmatprep.subr.mxu0 0.0
  %1517 = vmatpush1.msra.mxu0 %v1402
  %1518 = vmatprep.subr.mxu0 0.0
  %1519 = vmatpush1.msra.mxu0 %v1403
  %1520 = vmatprep.subr.mxu0 0.0
  %1521 = vmatpush1.msra.mxu0 %v1404
  %1522 = vmatprep.subr.mxu0 0.0
  %1523 = vmatpush1.msra.mxu0 %v1405
  %1524 = vmatprep.subr.mxu0 0.0
  %1525 = vmatpush1.msra.mxu0 0.0
  %1526 = vmatprep.subr.mxu0 0.0
  %1527 = vmatpush1.msra.mxu0 0.0
  %1528 = vmatprep.subr.mxu0 0.0
  %1529 = vmatpush1.msra.mxu0 0.0
  %1530 = vmatprep.subr.mxu0 0.0
  %1531 = vmatpush1.msra.mxu0 0.0
  %1532 = vmatprep.subr.mxu0 0.0
  %1533 = vmatpush1.msra.mxu0 0.0
  %1534 = vmatprep.subr.mxu0 0.0
  %1535 = vmatpush1.msra.mxu0 0.0
  %1536 = vmatprep.subr.mxu0 0.0
  %1537 = vmatpush1.msra.mxu0 0.0
  %1538 = vmatprep.subr.mxu0 0.0
  %1539 = vmatpush1.msra.mxu0 0.0
  %1540 = vmatprep.subr.mxu0 0.0
  %1541 = vmatpush1.msra.mxu0 0.0
  %1542 = vmatprep.subr.mxu0 0.0
  %1543 = vmatpush1.msra.mxu0 0.0
  %1544 = vmatprep.subr.mxu0 0.0
  %1545 = vmatpush1.msra.mxu0 0.0
  %1546 = vmatprep.subr.mxu0 0.0
  %1547 = vmatpush1.msra.mxu0 0.0
  %1548 = vmatprep.subr.mxu0 0.0
  %1549 = vmatpush1.msra.mxu0 0.0
  %1550 = vmatprep.subr.mxu0 0.0
  %1551 = vmatpush1.msra.mxu0 0.0
  %1552 = vmatprep.subr.mxu0 0.0
  %1553 = vmatpush1.msra.mxu0 0.0
  %1554 = vmatprep.subr.mxu0 0.0
  %1555 = vmatpush1.msra.mxu0 0.0
  %1556 = vmatprep.mubr.f32.mxu0 0.0
  %1557 = vmatmul.mubr.f32.gmra.mrb[0].mxu0 %v1474
  %v1558 = vpop.f32.mrb[0].mxu0
  %v1559 = vadd.f32 0.0, %v1558
  %v1560 = vpop.f32.mrb[0].mxu0
  %1561 = vmatprep.mubr.f32.mxu0 0.0
  %1562 = vmatmul.mubr.f32.gmra.mrb[0].mxu0 %v1479
  %v1563 = vpop.f32.mrb[0].mxu0
  %v1564 = vadd.f32 0.0, %v1563
  %v1565 = vpop.f32.mrb[0].mxu0
  %1566 = vmatprep.mubr.f32.mxu0 0.0
  %1567 = vmatmul.mubr.f32.gmra.mrb[0].mxu0 %v1484
  %v1568 = vpop.f32.mrb[0].mxu0
  %v1569 = vadd.f32 0.0, %v1568
  %v1570 = vpop.f32.mrb[0].mxu0
  %1571 = vmatprep.mubr.f32.mxu0 0.0
  %1572 = vmatmul.mubr.f32.gmra.mrb[0].mxu0 %v1489
  %v1573 = vpop.f32.mrb[0].mxu0
  %v1574 = vadd.f32 0.0, %v1573
  %v1575 = vpop.f32.mrb[0].mxu0
  %1576 = vdwg.mxu0
  %1581 = vrot.lane.b32.xlu0 %v1559, 127
  %v1582 = vpop.permute.xlu0 %1581
  %1583 = vrot.lane.b32.xlu0 %v1564, 127
  %v1584 = vpop.permute.xlu0 %1583
  %1585 = vrot.lane.b32.xlu0 %v1569, 127
  %v1586 = vpop.permute.xlu0 %1585
  %1587 = vrot.lane.b32.xlu0 %v1574, 127
  %v1588 = vpop.permute.xlu0 %1587
  %1593 = vxpose.xlu0.b32.start [1/16] %v1582, 128
  %1594 = vxpose.xlu0.b32.cont [2/16] %v1584, 128
  %1595 = vxpose.xlu0.b32.cont [3/16] %v1586, 128
  %1596 = vxpose.xlu0.b32.cont [4/16] %v1588, 128
  %1597 = vxpose.xlu0.b32.cont [5/16] 0.0, 128
  %1598 = vxpose.xlu0.b32.cont [6/16] 0.0, 128
  %1599 = vxpose.xlu0.b32.cont [7/16] 0.0, 128
  %1600 = vxpose.xlu0.b32.cont [8/16] 0.0, 128
  %1601 = vxpose.xlu0.b32.cont [9/16] 0.0, 128
  %1602 = vxpose.xlu0.b32.cont [10/16] 0.0, 128
  %1603 = vxpose.xlu0.b32.cont [11/16] 0.0, 128
  %1604 = vxpose.xlu0.b32.cont [12/16] 0.0, 128
  %1605 = vxpose.xlu0.b32.cont [13/16] 0.0, 128
  %1606 = vxpose.xlu0.b32.cont [14/16] 0.0, 128
  %1607 = vxpose.xlu0.b32.cont [15/16] 0.0, 128
  %1608 = vxpose.xlu0.b32.end [16/16] 0.0, 128
  %v1609 = vpop.trf.xlu0
  %v1610 = vpop.trf.xlu0
  %v1611 = vpop.trf.xlu0
  %v1612 = vpop.trf.xlu0
  %v1613 = vpop.trf.xlu0
  %v1614 = vpop.trf.xlu0
  %v1615 = vpop.trf.xlu0
  %v1616 = vpop.trf.xlu0
  %v1617 = vpop.trf.xlu0
  %v1618 = vpop.trf.xlu0
  %v1619 = vpop.trf.xlu0
  %v1620 = vpop.trf.xlu0
  %v1621 = vpop.trf.xlu0
  %v1622 = vpop.trf.xlu0
  %v1623 = vpop.trf.xlu0
  %v1624 = vpop.trf.xlu0
  %1625 = vset.pattern.permute.xlu0 0
  %1626 = vperm.xlu0 %1625, %v1559
  %v1627 = vpop.permute.xlu0 %1626
  %1629 = vset.pattern.permute.xlu0 0
  %1630 = vperm.xlu0 %1629, %v1564
  %v1631 = vpop.permute.xlu0 %1630
  %1633 = vset.pattern.permute.xlu0 0
  %1634 = vperm.xlu0 %1633, %v1569
  %v1635 = vpop.permute.xlu0 %1634
  %1637 = vset.pattern.permute.xlu0 0
  %1638 = vperm.xlu0 %1637, %v1574
  %v1639 = vpop.permute.xlu0 %1638
  %v1641 = vlaneseq
  %v1642 = vshrl.u32 %v1641, 7
  %v1643 = vsub.s32 0, %v1642
  %v1644 = vrot.slane %v1609, %v1643
  %v1645 = vadd.f32 %v1627, %v1644
  %v1646 = vadd.f32 %v1631, %v1644
  %v1647 = vadd.f32 %v1635, %v1644
  %v1648 = vadd.f32 %v1639, %v1644
  %vm1649 = vcmp.ge.f32.partialorder %v1645, 0.0
  %vm1650 = vcmp.ge.f32.partialorder %v1646, 0.0
  %vm1651 = vcmp.ge.f32.partialorder %v1647, 0.0
  %vm1652 = vcmp.ge.f32.partialorder %v1648, 0.0
  %v1653 = vmul.f32 %v1645, 0.2
  %v1654 = vmul.f32 %v1646, 0.2
  %v1655 = vmul.f32 %v1647, 0.2
  %v1656 = vmul.f32 %v1648, 0.2
  %v1657 = vsel %vm1649, %v1645, %v1653
  %v1658 = vsel %vm1650, %v1646, %v1654
  %v1659 = vsel %vm1651, %v1647, %v1655
  %v1660 = vsel %vm1652, %v1648, %v1656
  %v1661 = vmul.f32 %v1657, 1.442695
  %v1662 = vpow.pop %v1661
  %v1663 = vmul.f32 %v1658, 1.442695
  %v1664 = vpow.pop %v1663
  %v1665 = vmul.f32 %v1659, 1.442695
  %v1666 = vpow.pop %v1665
  %v1667 = vmul.f32 %v1660, 1.442695
  %v1668 = vpow.pop %v1667
  %v1669 = vmul.f32 %v29, %v1662
  %v1670 = vmul.f32 %v30, %v1664
  %v1671 = vmul.f32 %v31, %v1666
  %v1672 = vmul.f32 %v32, %v1668
  %v1673 = vsel %vm1213, %v1669, 0.0
  %1674 = vadd.xlane.f32.xlu0 %v1673
  %v1675 = vpop.xlane.xlu0 %1674
  %v1676 = vsel %vm1213, %v1670, 0.0
  %1677 = vadd.xlane.f32.xlu0 %v1676
  %v1678 = vpop.xlane.xlu0 %1677
  %v1679 = vsel %vm1213, %v1671, 0.0
  %1680 = vadd.xlane.f32.xlu0 %v1679
  %v1681 = vpop.xlane.xlu0 %1680
  %v1682 = vsel %vm1213, %v1672, 0.0
  %1683 = vadd.xlane.f32.xlu0 %v1682
  %v1684 = vpop.xlane.xlu0 %1683
  %v1685 = vadd.f32 %v1675, 0.001
  %v1686 = vadd.f32 %v1678, 0.001
  %v1687 = vadd.f32 %v1681, 0.001
  %v1688 = vadd.f32 %v1684, 0.001
  %v1689 = vrcp.pop %v1685
  %v1690 = vmul.f32 %v1669, %v1689
  %v1691 = vrcp.pop %v1686
  %v1692 = vmul.f32 %v1670, %v1691
  %v1693 = vrcp.pop %v1687
  %v1694 = vmul.f32 %v1671, %v1693
  %v1695 = vrcp.pop %v1688
  %v1696 = vmul.f32 %v1672, %v1695
  %v1698 = vlaneseq
  %v1699 = vshrl.u32 %v1698, 7
  %v1700 = vsub.s32 0, %v1699
  %v1701 = vrot.slane %v1406, %v1700
  %v1704 = vsel %vm1213, %v1690, 0
  %v1707 = vsel %vm1213, %v1692, 0
  %v1710 = vsel %vm1213, %v1694, 0
  %v1713 = vsel %vm1213, %v1696, 0
  %1715 = vmatprep.subr.mxu0 0.0
  %1716 = vmatpush1.msra.mxu0 %v1474
  %1717 = vmatprep.subr.mxu0 0.0
  %1718 = vmatpush1.msra.mxu0 %v1479
  %1719 = vmatprep.subr.mxu0 0.0
  %1720 = vmatpush1.msra.mxu0 %v1484
  %1721 = vmatprep.subr.mxu0 0.0
  %1722 = vmatpush1.msra.mxu0 %v1489
  %1723 = vmatprep.subr.mxu0 0.0
  %1724 = vmatpush1.msra.mxu0 0.0
  %1725 = vmatprep.subr.mxu0 0.0
  %1726 = vmatpush1.msra.mxu0 0.0
  %1727 = vmatprep.subr.mxu0 0.0
  %1728 = vmatpush1.msra.mxu0 0.0
  %1729 = vmatprep.subr.mxu0 0.0
  %1730 = vmatpush1.msra.mxu0 0.0
  %1731 = vmatprep.subr.mxu0 0.0
  %1732 = vmatpush1.msra.mxu0 0.0
  %1733 = vmatprep.subr.mxu0 0.0
  %1734 = vmatpush1.msra.mxu0 0.0
  %1735 = vmatprep.subr.mxu0 0.0
  %1736 = vmatpush1.msra.mxu0 0.0
  %1737 = vmatprep.subr.mxu0 0.0
  %1738 = vmatpush1.msra.mxu0 0.0
  %1739 = vmatprep.subr.mxu0 0.0
  %1740 = vmatpush1.msra.mxu0 0.0
  %1741 = vmatprep.subr.mxu0 0.0
  %1742 = vmatpush1.msra.mxu0 0.0
  %1743 = vmatprep.subr.mxu0 0.0
  %1744 = vmatpush1.msra.mxu0 0.0
  %1745 = vmatprep.subr.mxu0 0.0
  %1746 = vmatpush1.msra.mxu0 0.0
  %1747 = vmatprep.subr.mxu0 0.0
  %1748 = vmatpush1.msra.mxu0 0.0
  %1749 = vmatprep.subr.mxu0 0.0
  %1750 = vmatpush1.msra.mxu0 0.0
  %1751 = vmatprep.subr.mxu0 0.0
  %1752 = vmatpush1.msra.mxu0 0.0
  %1753 = vmatprep.subr.mxu0 0.0
  %1754 = vmatpush1.msra.mxu0 0.0
  %1755 = vmatprep.subr.mxu0 0.0
  %1756 = vmatpush1.msra.mxu0 0.0
  %1757 = vmatprep.subr.mxu0 0.0
  %1758 = vmatpush1.msra.mxu0 0.0
  %1759 = vmatprep.subr.mxu0 0.0
  %1760 = vmatpush1.msra.mxu0 0.0
  %1761 = vmatprep.subr.mxu0 0.0
  %1762 = vmatpush1.msra.mxu0 0.0
  %1763 = vmatprep.subr.mxu0 0.0
  %1764 = vmatpush1.msra.mxu0 0.0
  %1765 = vmatprep.subr.mxu0 0.0
  %1766 = vmatpush1.msra.mxu0 0.0
  %1767 = vmatprep.subr.mxu0 0.0
  %1768 = vmatpush1.msra.mxu0 0.0
  %1769 = vmatprep.subr.mxu0 0.0
  %1770 = vmatpush1.msra.mxu0 0.0
  %1771 = vmatprep.subr.mxu0 0.0
  %1772 = vmatpush1.msra.mxu0 0.0
  %1773 = vmatprep.subr.mxu0 0.0
  %1774 = vmatpush1.msra.mxu0 0.0
  %1775 = vmatprep.subr.mxu0 0.0
  %1776 = vmatpush1.msra.mxu0 0.0
  %1777 = vmatprep.subr.mxu0 0.0
  %1778 = vmatpush1.msra.mxu0 0.0
  %1779 = vmatprep.mubr.f32.mxu0 0.0
  %1780 = vmatmul.mubr.f32.gmra.mrb[0].mxu0 %v1704
  %v1781 = vpop.f32.mrb[0].mxu0
  %v1782 = vadd.f32 %v1701, %v1781
  %v1783 = vpop.f32.mrb[0].mxu0
  %1784 = vmatprep.mubr.f32.mxu0 0.0
  %1785 = vmatmul.mubr.f32.gmra.mrb[0].mxu0 %v1707
  %v1786 = vpop.f32.mrb[0].mxu0
  %v1787 = vadd.f32 %v1701, %v1786
  %v1788 = vpop.f32.mrb[0].mxu0
  %1789 = vmatprep.mubr.f32.mxu0 0.0
  %1790 = vmatmul.mubr.f32.gmra.mrb[0].mxu0 %v1710
  %v1791 = vpop.f32.mrb[0].mxu0
  %v1792 = vadd.f32 %v1701, %v1791
  %v1793 = vpop.f32.mrb[0].mxu0
  %1794 = vmatprep.mubr.f32.mxu0 0.0
  %1795 = vmatmul.mubr.f32.gmra.mrb[0].mxu0 %v1713
  %v1796 = vpop.f32.mrb[0].mxu0
  %v1797 = vadd.f32 %v1701, %v1796
  %v1798 = vpop.f32.mrb[0].mxu0
  %1799 = vdwg.mxu0
  %v1800 = vmax.f32 %v1782, 0.0
  %v1801 = vmax.f32 %v1787, 0.0
  %v1802 = vmax.f32 %v1792, 0.0
  %v1803 = vmax.f32 %v1797, 0.0
  %1804 = vst [vmem:[%s8] sm:$0xff] %v1800
  %1805 = vst [vmem:[%s8 + $0x8] sm:$0xff] %v1801
  %1806 = vst [vmem:[%s8 + $0x10] sm:$0xff] %v1802
  %1807 = vst [vmem:[%s8 + $0x18] sm:$0xff] %v1803
  // Predicated region
  $region34: #{gat_forward.1} parent=0 // pred_check
    _
  $region35: #{gat_forward.1} parent=0 // pred_check_branch
    %1809 = sbr.rel (0) target = $region37
  $region36: #{gat_forward.1} parent=0 // pred_region
    _
  $region37: #{gat_forward.1} parent=0 // pred_fallthru
    _
  // Predicated region
  $region38: #{gat_forward.1} parent=0 // pred_check
    _
  $region39: #{gat_forward.1} parent=0 // pred_check_branch
    %1811 = sbr.rel (0) target = $region41
  $region40: #{gat_forward.1} parent=0 // pred_region
    _
  $region41: #{gat_forward.1} parent=0 // pred_fallthru
    _

</llo_original>
